<compile_context>
chip_gen: v7x
topology: tpu7x:2x2x1
jax: 0.10.0
libtpu: 0.0.40
codegen_flags: <defaults>
</compile_context>

<pallas_src>
import numpy as np
import jax
import jax.numpy as jnp
from jax.experimental import pallas as pl
from jax.experimental.pallas import tpu as pltpu

# ----------------------------- module hyper-params (small) -------------------
N_MELS = 16
ENC_DIMS = 32
DEC_DIMS = 16            # decoder_dims == LSA attn_dim
LSTM_DIMS = 32
SPK_EMB = 8
PROSODY_EMB = 0          # see NOTE above
MAX_R = 20
R = 1                    # register_buffer r = 1
ATTN_FILTERS = 32
ATTN_KERNEL = 31
PRENET_DIMS = DEC_DIMS * 2
DROPOUT_P = 0.5

B = 2
T = 8
S = 4                    # number of decode steps executed inside ONE kernel call
E = ENC_DIMS + SPK_EMB + 2 * PROSODY_EMB        # encoder_seq feature dim (40)
CTX_IN = ENC_DIMS + SPK_EMB + PROSODY_EMB       # incoming context_vec dim (40)

LANE = 128
TD = T * DEC_DIMS        # 128 (flat attention width)

# ----- weight slab layout (6 x 128 columns, shared groups, f32) --------------
WC_WQT = 0        # LSA W tiled over T        rows 0:D      cols 128   bias: w_b tiled
WC_CONVL = 128    # conv(x)L folded           rows 0:T      cols 128   bias: (conv_b@L) tiled
WC_L1 = 256       # lstm1: wih rows 0:L, whh rows L:2L      cols 128   bias: bih+bhh
WC_L2 = 384       # lstm2                                              bias: bih+bhh
WC_GRU = 512      # GRU [r|z|n_in|n_h]: ctx rows 0:40, pre 40:72, hid 72:88 (64 cols)
WC_FC1 = 576      # prenet fc1 rows 0:16 (32 cols)
WC_FC2 = 608      # prenet fc2 rows 0:32 (32 cols)
WC_RNNIN = 640    # rnn_input: ctx rows 0:40, attn rows 40:56 (32 cols)
WC_MS = 672       # mel(trim)+stop: x rows 0:32, ctx rows 32:72 (17 cols used)
WC_VEXP = 704     # LSA v block-diagonal expansion rows 0:128 (8 cols)
W_COLS = 768
BIAS_ROW = 128
W_ROWS = 136

# ----- constant per-call slab (B, C_COLS) -------------------------------------
CC_EPROJ = 0      # encoder_seq_proj flattened (T*D = 128)
CC_ATTNH = 128    # initial attn_hidden (16)
CC_CTX = 144      # initial context_vec (40)
CC_MASK = 184     # (chars != 0) mask (T = 8)
CC_R1H = 192      # (32)
CC_R1C = 224
CC_R2H = 256
CC_R2C = 288
C_COLS = 384

# ----- per-step input slab (S, B, P_COLS) -------------------------------------
PC_PRE = 0        # prenet_in (16)
PC_D1 = 16        # prenet dropout mask 1 (32)
PC_D2 = 48        # prenet dropout mask 2 (32)
P_COLS = 128

# ----- densely packed per-step output slab (S, B, O_COLS) ---------------------
OC_MEL = 0                      # 16
OC_SCORES = 16                  # 8
OC_ATTNH = 24                   # 16
OC_H1 = 40                      # 32
OC_H2 = 72                      # 32
OC_C1 = 104                     # 32
OC_C2 = 136                     # 32
OC_CTX = 168                    # 40
OC_STOP = 208                   # 1
OC_END = 209
O_COLS = 256


def _sigmoid(x):
    # exact sigmoid via a single tanh EUP push
    return 0.5 * (jnp.tanh(0.5 * x) + 1.0)


def _mm(a, w):
    return jnp.dot(a, w, preferred_element_type=jnp.float32)


# ----------------------------- Pallas kernel ---------------------------------
def decoder_kernel(w_ref, c_ref, e_ref, p_ref, o_ref,
                   attn_h_sc, ctx_sc, r1h_sc, r1c_sc, r2h_sc, r2c_sc, cum_sc):
    D, L, P = DEC_DIMS, LSTM_DIMS, PRENET_DIMS
    step = pl.program_id(0)

    # ---- step 0: load initial recurrent state, reset LSA cumulative ----------
    @pl.when(step == 0)
    def _():
        attn_h_sc[...] = c_ref[:, CC_ATTNH:CC_ATTNH + D]
        ctx_sc[...] = c_ref[:, CC_CTX:CC_CTX + E]
        r1h_sc[...] = c_ref[:, CC_R1H:CC_R1H + L]
        r1c_sc[...] = c_ref[:, CC_R1C:CC_R1C + L]
        r2h_sc[...] = c_ref[:, CC_R2H:CC_R2H + L]
        r2c_sc[...] = c_ref[:, CC_R2C:CC_R2C + L]
        cum_sc[...] = jnp.zeros_like(cum_sc)       # LSA.init_attention (t == 0)

    def w(r0, rows, c0, cols):                     # static weight sub-block view
        return w_ref[r0:r0 + rows, c0:c0 + cols]

    def aux(c0, cols):                             # bias / aux row of a block
        return w_ref[BIAS_ROW:BIAS_ROW + 1, c0:c0 + cols]

    # ---- per-step inputs ----
    step_in = p_ref[0]                                            # (B, P_COLS)
    prenet_in = step_in[:, PC_PRE:PC_PRE + N_MELS]
    drop1 = step_in[:, PC_D1:PC_D1 + P]
    drop2 = step_in[:, PC_D2:PC_D2 + P]

    enc_proj_flat = c_ref[:, CC_EPROJ:CC_EPROJ + TD]              # (B, T*D)
    cmask = c_ref[:, CC_MASK:CC_MASK + T]                         # (B, T)

    # ---- carried recurrent state ----
    attn_h = attn_h_sc[...]
    ctx_in = ctx_sc[...]
    r1h, r1c = r1h_sc[...], r1c_sc[...]
    r2h, r2c = r2h_sc[...], r2c_sc[...]
    cum = cum_sc[...]

    # ---- PreNet: fc1 -> relu -> dropout -> fc2 -> relu -> dropout ----
    h = jnp.maximum(_mm(prenet_in, w(0, N_MELS, WC_FC1, P)) + aux(WC_FC1, P), 0.0) * drop1
    pre = jnp.maximum(_mm(h, w(0, P, WC_FC2, P)) + aux(WC_FC2, P), 0.0) * drop2

    # ---- attention GRUCell: split dots (no lane concat), cols = [r|z|n_in|n_h] ----
    g = (_mm(ctx_in, w(0, CTX_IN, WC_GRU, 4 * D))
         + _mm(pre, w(CTX_IN, P, WC_GRU, 4 * D))
         + _mm(attn_h, w(CTX_IN + P, D, WC_GRU, 4 * D))
         + aux(WC_GRU, 4 * D))
    rz = _sigmoid(g[:, :2 * D])
    r, z = rz[:, :D], rz[:, D:2 * D]
    n = jnp.tanh(g[:, 2 * D:3 * D] + r * g[:, 3 * D:4 * D])
    attn_h_new = (1.0 - z) * n + z * attn_h

    # ---- LSA attention, flat lane-dense (B, T*D) layout ----
    pq = _mm(attn_h_new, w(0, D, WC_WQT, TD)) + aux(WC_WQT, TD)        # W(query), tiled over T
    ploc = _mm(cum, w(0, T, WC_CONVL, TD)) + aux(WC_CONVL, TD)         # conv+L folded on cumulative
    th = jnp.tanh(pq + enc_proj_flat + ploc)                           # (B, T*D)
    u = _mm(th, w(0, TD, WC_VEXP, T)) * cmask                          # (B, T), v reduction as matmul
    m = jnp.max(u, axis=-1, keepdims=True)
    eu = jnp.exp(u - m)
    scores = eu / jnp.sum(eu, axis=-1, keepdims=True)                  # exact (feeds cumulative)
    ctx = jnp.sum(scores[:, :, None] * e_ref[...], axis=1)             # (B, E)

    # ---- rnn_input Linear (split dots) ----
    x = (_mm(ctx, w(0, E, WC_RNNIN, L))
         + _mm(attn_h_new, w(E, D, WC_RNNIN, L))
         + aux(WC_RNNIN, L))

    # ---- residual LSTM cells (split dots; gate order i|f|g|o) ----
    def lstm(xv, hp, cp, c0):
        gg = _mm(xv, w(0, L, c0, 4 * L)) + _mm(hp, w(L, L, c0, 4 * L)) + aux(c0, 4 * L)
        sg = _sigmoid(gg)
        tg = jnp.tanh(gg)
        c = sg[:, L:2 * L] * cp + sg[:, :L] * tg[:, 2 * L:3 * L]
        return sg[:, 3 * L:] * jnp.tanh(c), c

    h1, c1 = lstm(x, r1h, r1c, WC_L1)
    x = x + h1                       # eval-mode zoneout (hidden := hidden_next)
    h2, c2 = lstm(x, r2h, r2c, WC_L2)
    x = x + h2

    # ---- fused (r-trimmed) mel projection + stop projection (split dots) ----
    MS = N_MELS * R + 1
    y = _mm(x, w(0, L, WC_MS, MS)) + _mm(ctx, w(L, E, WC_MS, MS)) + aux(WC_MS, MS)
    mels = y[:, :N_MELS * R]
    stop = _sigmoid(y[:, N_MELS * R:MS])

    # ---- carry recurrent state to the next decode step ----
    attn_h_sc[...] = attn_h_new
    ctx_sc[...] = ctx
    r1h_sc[...] = h1
    r1c_sc[...] = c1
    r2h_sc[...] = h2
    r2c_sc[...] = c2
    cum_sc[...] = cum + scores

    # ---- single full-width packed store (no zero pre-pass, no masked stores) ----
    pad = jnp.zeros((B, O_COLS - OC_END), jnp.float32)
    o_ref[0] = jnp.concatenate(
        [mels, scores, attn_h_new, h1, h2, c1, c2, ctx, stop, pad], axis=1)


# ----------------------------- wrapper ----------------------------------------
def decoder_decode(w_slab, c_slab, enc_seq, step_slab):
    n_steps = step_slab.shape[0]
    out = pl.pallas_call(
        decoder_kernel,
        out_shape=jax.ShapeDtypeStruct((n_steps, B, O_COLS), jnp.float32),
        grid_spec=pltpu.PrefetchScalarGridSpec(
            num_scalar_prefetch=0,
            grid=(n_steps,),
            in_specs=[
                pl.BlockSpec((W_ROWS, W_COLS), lambda s: (0, 0)),      # weights, resident
                pl.BlockSpec((B, C_COLS), lambda s: (0, 0)),           # constants, resident
                pl.BlockSpec((B, T, E), lambda s: (0, 0, 0)),          # encoder_seq, resident
                pl.BlockSpec((1, B, P_COLS), lambda s: (s, 0, 0)),     # per-step inputs
            ],
            out_specs=pl.BlockSpec((1, B, O_COLS), lambda s: (s, 0, 0)),
            scratch_shapes=[
                pltpu.VMEM((B, DEC_DIMS), jnp.float32),   # attn_hidden
                pltpu.VMEM((B, E), jnp.float32),          # context_vec
                pltpu.VMEM((B, LSTM_DIMS), jnp.float32),  # rnn1 hidden
                pltpu.VMEM((B, LSTM_DIMS), jnp.float32),  # rnn1 cell
                pltpu.VMEM((B, LSTM_DIMS), jnp.float32),  # rnn2 hidden
                pltpu.VMEM((B, LSTM_DIMS), jnp.float32),  # rnn2 cell
                pltpu.VMEM((B, T), jnp.float32),          # LSA cumulative attention
            ],
        ),
        compiler_params=pltpu.CompilerParams(dimension_semantics=("arbitrary",)),
    )(w_slab, c_slab, enc_seq, step_slab)

    mels = out[:, :, OC_MEL:OC_MEL + N_MELS * R].reshape(n_steps, B, N_MELS, R)
    scores = out[:, :, OC_SCORES:OC_SCORES + T][:, :, None, :]          # (S, B, 1, T)
    attn_h = out[:, :, OC_ATTNH:OC_ATTNH + DEC_DIMS]
    h1 = out[:, :, OC_H1:OC_H1 + LSTM_DIMS]
    h2 = out[:, :, OC_H2:OC_H2 + LSTM_DIMS]
    c1 = out[:, :, OC_C1:OC_C1 + LSTM_DIMS]
    c2 = out[:, :, OC_C2:OC_C2 + LSTM_DIMS]
    ctx = out[:, :, OC_CTX:OC_CTX + E]
    stop = out[:, :, OC_STOP:OC_STOP + 1]
    return mels, scores, (attn_h, h1, h2), (c1, c2), ctx, stop


# ----------------------------- host-side packing -----------------------------
def pack_weight_slab(p):
    ws = np.zeros((W_ROWS, W_COLS), np.float32)
    D, L, P = DEC_DIMS, LSTM_DIMS, PRENET_DIMS

    def put(r0, c0, mat):
        mat = np.asarray(mat, np.float32)
        ws[r0:r0 + mat.shape[0], c0:c0 + mat.shape[1]] = mat

    def put_bias(c0, vec):
        vec = np.asarray(vec, np.float32).reshape(-1)
        ws[BIAS_ROW, c0:c0 + vec.shape[0]] = vec

    # PreNet
    put(0, WC_FC1, p['fc1_w']); put_bias(WC_FC1, p['fc1_b'])
    put(0, WC_FC2, p['fc2_w']); put_bias(WC_FC2, p['fc2_b'])

    # GRU: cols [r|z|n_in|n_h]; rows stacked ctx / prenet / hidden for split dots.
    wih = np.concatenate([np.asarray(p['gru_wih_ctx'], np.float32),
                          np.asarray(p['gru_wih_pre'], np.float32)], axis=0)
    whh = np.asarray(p['gru_whh'], np.float32)
    n_in = CTX_IN + P
    gru_w = np.zeros((n_in + D, 4 * D), np.float32)
    gru_w[:n_in, 0:2 * D] = wih[:, 0:2 * D]
    gru_w[n_in:, 0:2 * D] = whh[:, 0:2 * D]
    gru_w[:n_in, 2 * D:3 * D] = wih[:, 2 * D:3 * D]
    gru_w[n_in:, 3 * D:4 * D] = whh[:, 2 * D:3 * D]
    put(0, WC_GRU, gru_w)
    bih = np.asarray(p['gru_bih'], np.float32).reshape(-1)
    bhh = np.asarray(p['gru_bhh'], np.float32).reshape(-1)
    put_bias(WC_GRU, np.concatenate([bih[:2 * D] + bhh[:2 * D], bih[2 * D:], bhh[2 * D:]]))

    # LSA W (query projection) tiled over the T token slots, bias tiled.
    put(0, WC_WQT, np.tile(np.asarray(p['w_w'], np.float32), (1, T)))
    put_bias(WC_WQT, np.tile(np.asarray(p['w_b'], np.float32).reshape(1, -1), (1, T)))

    # LSA Conv1d(1,F,K) folded with L into a (T, T*D) matmul applied to cumulative.
    cw_l = np.asarray(p['conv_w'], np.float32) @ np.asarray(p['l_w'], np.float32)   # (K, D)
    pad = (ATTN_KERNEL - 1) // 2
    cm = np.zeros((T, TD), np.float32)
    for tt in range(T):
        for jj in range(T):
            kk = jj - tt + pad
            if 0 <= kk < ATTN_KERNEL:
                cm[jj, tt * D:(tt + 1) * D] = cw_l[kk]
    put(0, WC_CONVL, cm)
    cb_l = (np.asarray(p['conv_b'], np.float32) @ np.asarray(p['l_w'], np.float32)).reshape(-1)
    put_bias(WC_CONVL, np.tile(cb_l, T))

    # LSA v reduction as a block-diagonal (T*D, T) matmul.
    put(0, WC_VEXP, np.kron(np.eye(T, dtype=np.float32),
                            np.asarray(p['v_w'], np.float32).reshape(D, 1)))

    # rnn_input: ctx rows then attn_hidden rows (split dots)
    put(0, WC_RNNIN, p['rnnin_w_ctx'])
    put(E, WC_RNNIN, p['rnnin_w_att'])
    put_bias(WC_RNNIN, p['rnnin_b'])

    # residual LSTM cells: wih rows 0:L, whh rows L:2L, bias = bih + bhh
    for name, col in (('l1', WC_L1), ('l2', WC_L2)):
        put(0, col, p[f'{name}_wih'])
        put(L, col, p[f'{name}_whh'])
        put_bias(col, np.asarray(p[f'{name}_bih'], np.float32).reshape(-1)
                 + np.asarray(p[f'{name}_bhh'], np.float32).reshape(-1))

    # fused mel(trimmed to the r columns kept by .view(...)[:, :, :r]) + stop
    keep_cols = [m * MAX_R + j for m in range(N_MELS) for j in range(R)]
    ms = np.zeros((L + E, N_MELS * R + 1), np.float32)
    ms[:L, :N_MELS * R] = np.asarray(p['mel_w'], np.float32)[:, keep_cols]
    ms[:L, N_MELS * R] = np.asarray(p['stop_w_x'], np.float32).reshape(-1)
    ms[L:, N_MELS * R] = np.asarray(p['stop_w_ctx'], np.float32).reshape(-1)
    put(0, WC_MS, ms)
    ms_b = np.zeros((N_MELS * R + 1,), np.float32)
    ms_b[N_MELS * R] = float(np.asarray(p['stop_b']).reshape(-1)[0])
    put_bias(WC_MS, ms_b)
    return jnp.asarray(ws)


def pack_const_slab(d):
    c = np.zeros((B, C_COLS), np.float32)
    c[:, CC_EPROJ:CC_EPROJ + TD] = np.asarray(d['enc_proj']).reshape(B, TD)
    c[:, CC_ATTNH:CC_ATTNH + DEC_DIMS] = np.asarray(d['attn_h'])
    c[:, CC_CTX:CC_CTX + E] = np.asarray(d['ctx_in'])
    c[:, CC_MASK:CC_MASK + T] = np.asarray(d['cmask'])
    c[:, CC_R1H:CC_R1H + LSTM_DIMS] = np.asarray(d['r1h'])
    c[:, CC_R1C:CC_R1C + LSTM_DIMS] = np.asarray(d['r1c'])
    c[:, CC_R2H:CC_R2H + LSTM_DIMS] = np.asarray(d['r2h'])
    c[:, CC_R2C:CC_R2C + LSTM_DIMS] = np.asarray(d['r2c'])
    return jnp.asarray(c)


def pack_step_slab(d):
    s = np.zeros((S, B, P_COLS), np.float32)
    s[:, :, PC_PRE:PC_PRE + N_MELS] = np.asarray(d['prenet_seq'])
    s[:, :, PC_D1:PC_D1 + PRENET_DIMS] = np.asarray(d['drop1_seq'])
    s[:, :, PC_D2:PC_D2 + PRENET_DIMS] = np.asarray(d['drop2_seq'])
    return jnp.asarray(s)


# ----------------------------- deterministic setup ---------------------------
def _normal(key, shape, scale):
    return (scale * jax.random.normal(key, shape, dtype=jnp.float32)).astype(jnp.float32)


def build_params(key):
    keys = iter(jax.random.split(key, 40))
    nk = lambda: next(keys)
    s = 0.1
    p = {}
    p['fc1_w'] = _normal(nk(), (N_MELS, PRENET_DIMS), s)
    p['fc1_b'] = _normal(nk(), (1, PRENET_DIMS), s)
    p['fc2_w'] = _normal(nk(), (PRENET_DIMS, PRENET_DIMS), s)
    p['fc2_b'] = _normal(nk(), (1, PRENET_DIMS), s)
    p['gru_wih_ctx'] = _normal(nk(), (CTX_IN, 3 * DEC_DIMS), s)
    p['gru_wih_pre'] = _normal(nk(), (PRENET_DIMS, 3 * DEC_DIMS), s)
    p['gru_whh'] = _normal(nk(), (DEC_DIMS, 3 * DEC_DIMS), s)
    p['gru_bih'] = _normal(nk(), (1, 3 * DEC_DIMS), s)
    p['gru_bhh'] = _normal(nk(), (1, 3 * DEC_DIMS), s)
    p['conv_w'] = _normal(nk(), (ATTN_KERNEL, ATTN_FILTERS), s)   # Conv1d(1, F, K) as (K, F)
    p['conv_b'] = _normal(nk(), (1, ATTN_FILTERS), s)
    p['l_w'] = _normal(nk(), (ATTN_FILTERS, DEC_DIMS), s)
    p['w_w'] = _normal(nk(), (DEC_DIMS, DEC_DIMS), s)
    p['w_b'] = _normal(nk(), (1, DEC_DIMS), s)
    p['v_w'] = _normal(nk(), (1, DEC_DIMS), s)
    p['rnnin_w_ctx'] = _normal(nk(), (E, LSTM_DIMS), s)
    p['rnnin_w_att'] = _normal(nk(), (DEC_DIMS, LSTM_DIMS), s)
    p['rnnin_b'] = _normal(nk(), (1, LSTM_DIMS), s)
    for name in ('l1', 'l2'):
        p[f'{name}_wih'] = _normal(nk(), (LSTM_DIMS, 4 * LSTM_DIMS), s)
        p[f'{name}_whh'] = _normal(nk(), (LSTM_DIMS, 4 * LSTM_DIMS), s)
        p[f'{name}_bih'] = _normal(nk(), (1, 4 * LSTM_DIMS), s)
        p[f'{name}_bhh'] = _normal(nk(), (1, 4 * LSTM_DIMS), s)
    p['mel_w'] = _normal(nk(), (LSTM_DIMS, N_MELS * MAX_R), s)
    p['stop_w_x'] = _normal(nk(), (LSTM_DIMS, 1), s)
    p['stop_w_ctx'] = _normal(nk(), (E, 1), s)
    p['stop_b'] = _normal(nk(), (1, 1), s)
    return p


def build_data(key):
    keys = iter(jax.random.split(key, 16))
    nk = lambda: next(keys)
    d = {}
    d['prenet_seq'] = _normal(nk(), (S, B, N_MELS), 1.0)
    d['ctx_in'] = _normal(nk(), (B, CTX_IN), 1.0)
    d['enc_seq'] = _normal(nk(), (B, T, E), 1.0)
    d['enc_proj'] = _normal(nk(), (B, T, DEC_DIMS), 1.0)
    chars = jnp.array([[1, 2, 3, 4, 5, 0, 0, 0],
                       [1, 2, 3, 0, 0, 0, 0, 0]], dtype=jnp.int32)
    d['cmask'] = (chars != 0).astype(jnp.float32)                 # (B, T)
    d['attn_h'] = _normal(nk(), (B, DEC_DIMS), 1.0)
    d['r1h'] = _normal(nk(), (B, LSTM_DIMS), 1.0)
    d['r2h'] = _normal(nk(), (B, LSTM_DIMS), 1.0)
    d['r1c'] = _normal(nk(), (B, LSTM_DIMS), 1.0)
    d['r2c'] = _normal(nk(), (B, LSTM_DIMS), 1.0)
    keep = 1.0 - DROPOUT_P
    d['drop1_seq'] = jax.random.bernoulli(nk(), keep, (S, B, PRENET_DIMS)).astype(jnp.float32) / keep
    d['drop2_seq'] = jax.random.bernoulli(nk(), keep, (S, B, PRENET_DIMS)).astype(jnp.float32) / keep
    return d


# ----------------------------- pure-JAX reference ----------------------------
def reference_decode(p, d):
    """S sequential calls of the original PyTorch Decoder.forward (eval mode, t=0..S-1)."""
    sig = jax.nn.sigmoid
    D, L = DEC_DIMS, LSTM_DIMS
    attn_h, ctx = d['attn_h'], d['ctx_in']
    r1h, r1c, r2h, r2c = d['r1h'], d['r1c'], d['r2h'], d['r2c']
    cumulative = jnp.zeros((B, T), jnp.float32)          # LSA.init_attention at t == 0
    pad = (ATTN_KERNEL - 1) // 2
    outs = []
    for t_step in range(S):
        prenet_in = d['prenet_seq'][t_step]
        drop1, drop2 = d['drop1_seq'][t_step], d['drop2_seq'][t_step]

        # PreNet
        h = jnp.maximum(prenet_in @ p['fc1_w'] + p['fc1_b'], 0.0) * drop1
        pre = jnp.maximum(h @ p['fc2_w'] + p['fc2_b'], 0.0) * drop2

        # attention GRUCell on cat([context_vec, prenet_out])
        attn_in = jnp.concatenate([ctx, pre], axis=1)
        wih = jnp.concatenate([p['gru_wih_ctx'], p['gru_wih_pre']], axis=0)
        gi = attn_in @ wih + p['gru_bih']
        gh = attn_h @ p['gru_whh'] + p['gru_bhh']
        r = sig(gi[:, :D] + gh[:, :D])
        z = sig(gi[:, D:2 * D] + gh[:, D:2 * D])
        n = jnp.tanh(gi[:, 2 * D:] + r * gh[:, 2 * D:])
        attn_h = (1.0 - z) * n + z * attn_h

        # LSA attention
        pq = attn_h @ p['w_w'] + p['w_b']
        cum_pad = jnp.pad(cumulative, ((0, 0), (pad, pad)))
        patches = jnp.stack([cum_pad[:, k:k + T] for k in range(ATTN_KERNEL)], axis=-1)
        conv = patches.reshape(B * T, ATTN_KERNEL) @ p['conv_w'] + p['conv_b']
        ploc = (conv @ p['l_w']).reshape(B, T, D)
        u = jnp.sum(jnp.tanh(pq[:, None, :] + d['enc_proj'] + ploc) * p['v_w'].reshape(1, 1, D),
                    axis=-1)
        u = u * d['cmask']
        scores = jax.nn.softmax(u, axis=1)                            # (B, T)
        cumulative = cumulative + scores
        ctx = jnp.einsum('bt,bte->be', scores, d['enc_seq'])

        # rnn_input
        rw = jnp.concatenate([p['rnnin_w_ctx'], p['rnnin_w_att']], axis=0)
        x = jnp.concatenate([ctx, attn_h], axis=1) @ rw + p['rnnin_b']

        def lstm(xv, hp, cp, wih_, whh_, bih_, bhh_):
            g = xv @ wih_ + bih_ + hp @ whh_ + bhh_
            i = sig(g[:, :L]); f = sig(g[:, L:2 * L])
            gg = jnp.tanh(g[:, 2 * L:3 * L]); o = sig(g[:, 3 * L:])
            c = f * cp + i * gg
            return o * jnp.tanh(c), c

        h1, c1 = lstm(x, r1h, r1c, p['l1_wih'], p['l1_whh'], p['l1_bih'], p['l1_bhh'])
        r1h, r1c = h1, c1
        x = x + h1
        h2, c2 = lstm(x, r2h, r2c, p['l2_wih'], p['l2_whh'], p['l2_bih'], p['l2_bhh'])
        r2h, r2c = h2, c2
        x = x + h2

        mels = (x @ p['mel_w']).reshape(B, N_MELS, MAX_R)[:, :, :R]
        stop = sig(x @ p['stop_w_x'] + ctx @ p['stop_w_ctx'] + p['stop_b'])
        outs.append((mels, scores[:, None, :], attn_h, h1, h2, c1, c2, ctx, stop))

    stack = lambda i: jnp.stack([o[i] for o in outs], axis=0)
    return tuple(stack(i) for i in range(9))


if __name__ == "__main__":
    root = jax.random.PRNGKey(0)
    pkey, dkey = jax.random.split(root)
    params = build_params(pkey)
    data = build_data(dkey)

    w_slab = pack_weight_slab(params)
    c_slab = pack_const_slab(data)
    p_slab = pack_step_slab(data)
    enc_seq = jnp.asarray(data['enc_seq'])

    out = jax.block_until_ready(decoder_decode(w_slab, c_slab, enc_seq, p_slab))
    mels, scores, (attn_h, h1, h2), (c1, c2), ctx, stop = out

    (r_mels, r_scores, r_ah, r_h1, r_h2, r_c1, r_c2, r_ctx, r_stop) = reference_decode(params, data)
    pairs = [(mels, r_mels), (scores, r_scores), (attn_h, r_ah), (h1, r_h1), (h2, r_h2),
             (c1, r_c1), (c2, r_c2), (ctx, r_ctx), (stop, r_stop)]
    for got, want in pairs:
        assert got.shape == want.shape, (got.shape, want.shape)
        assert jnp.allclose(got, want, rtol=1e-2, atol=1e-2), "kernel/reference mismatch"

    assert mels.shape == (S, B, N_MELS, R)
    assert scores.shape == (S, B, 1, T)
    assert stop.shape == (S, B, 1)

    print("KERNEL_OK")
</pallas_src>

<mosaic_0001>
module attributes {stable_mosaic.version = 11 : i64} {
  func.func @decoder_kernel(%arg0: i32, %arg1: memref<136x768xf32, #tpu.memory_space<vmem>>, %arg2: memref<2x384xf32, #tpu.memory_space<vmem>>, %arg3: memref<2x8x40xf32, #tpu.memory_space<vmem>>, %arg4: memref<1x2x128xf32, #tpu.memory_space<vmem>>, %arg5: memref<1x2x256xf32, #tpu.memory_space<vmem>>, %arg6: memref<2x16xf32, #tpu.memory_space<vmem>>, %arg7: memref<2x40xf32, #tpu.memory_space<vmem>>, %arg8: memref<2x32xf32, #tpu.memory_space<vmem>>, %arg9: memref<2x32xf32, #tpu.memory_space<vmem>>, %arg10: memref<2x32xf32, #tpu.memory_space<vmem>>, %arg11: memref<2x32xf32, #tpu.memory_space<vmem>>, %arg12: memref<2x8xf32, #tpu.memory_space<vmem>>) attributes {dimension_semantics = [#tpu.dimension_semantics<arbitrary>], iteration_bounds = array<i64: 4>, scalar_prefetch = 0 : i64, scratch_operands = 7 : i64, tpu.core_type = #tpu.core_type<tc>, window_params = [{pipeline_mode = #tpu.pipeline_mode<synchronous>, transform_indices = @transform_0, window_bounds = array<i64: 136, 768>}, {pipeline_mode = #tpu.pipeline_mode<synchronous>, transform_indices = @transform_1, window_bounds = array<i64: 2, 384>}, {pipeline_mode = #tpu.pipeline_mode<synchronous>, transform_indices = @transform_2, window_bounds = array<i64: 2, 8, 40>}, {transform_indices = @transform_3, window_bounds = array<i64: 1, 2, 128>}, {transform_indices = @transform_4, window_bounds = array<i64: 1, 2, 256>}]} {
    %c0_i32 = arith.constant 0 : i32
    %0 = arith.cmpi eq, %arg0, %c0_i32 : i32
    %1 = arith.extui %0 : i1 to i32
    %c0_i32_0 = arith.constant 0 : i32
    %2 = arith.cmpi ne, %1, %c0_i32_0 : i32
    scf.if %2 {
      %c0_112 = arith.constant 0 : index
      %c128_113 = arith.constant 128 : index
      %184 = vector.load %arg2[%c0_112, %c128_113] : memref<2x384xf32, #tpu.memory_space<vmem>>, vector<2x16xf32>
      %c0_114 = arith.constant 0 : index
      %c0_115 = arith.constant 0 : index
      %185 = vector.load %arg6[%c0_114, %c0_115] : memref<2x16xf32, #tpu.memory_space<vmem>>, vector<2x16xf32>
      tpu.vector_store %arg6[%c0_114, %c0_115], %184 {strides = array<i32>} : memref<2x16xf32, #tpu.memory_space<vmem>>, vector<2x16xf32>,
      %c0_116 = arith.constant 0 : index
      %c144 = arith.constant 144 : index
      %186 = vector.load %arg2[%c0_116, %c144] : memref<2x384xf32, #tpu.memory_space<vmem>>, vector<2x40xf32>
      %c0_117 = arith.constant 0 : index
      %c0_118 = arith.constant 0 : index
      %187 = vector.load %arg7[%c0_117, %c0_118] : memref<2x40xf32, #tpu.memory_space<vmem>>, vector<2x40xf32>
      tpu.vector_store %arg7[%c0_117, %c0_118], %186 {strides = array<i32>} : memref<2x40xf32, #tpu.memory_space<vmem>>, vector<2x40xf32>,
      %c0_119 = arith.constant 0 : index
      %c192 = arith.constant 192 : index
      %188 = vector.load %arg2[%c0_119, %c192] : memref<2x384xf32, #tpu.memory_space<vmem>>, vector<2x32xf32>
      %c0_120 = arith.constant 0 : index
      %c0_121 = arith.constant 0 : index
      %189 = vector.load %arg8[%c0_120, %c0_121] : memref<2x32xf32, #tpu.memory_space<vmem>>, vector<2x32xf32>
      tpu.vector_store %arg8[%c0_120, %c0_121], %188 {strides = array<i32>} : memref<2x32xf32, #tpu.memory_space<vmem>>, vector<2x32xf32>,
      %c0_122 = arith.constant 0 : index
      %c224 = arith.constant 224 : index
      %190 = vector.load %arg2[%c0_122, %c224] : memref<2x384xf32, #tpu.memory_space<vmem>>, vector<2x32xf32>
      %c0_123 = arith.constant 0 : index
      %c0_124 = arith.constant 0 : index
      %191 = vector.load %arg9[%c0_123, %c0_124] : memref<2x32xf32, #tpu.memory_space<vmem>>, vector<2x32xf32>
      tpu.vector_store %arg9[%c0_123, %c0_124], %190 {strides = array<i32>} : memref<2x32xf32, #tpu.memory_space<vmem>>, vector<2x32xf32>,
      %c0_125 = arith.constant 0 : index
      %c256_126 = arith.constant 256 : index
      %192 = vector.load %arg2[%c0_125, %c256_126] : memref<2x384xf32, #tpu.memory_space<vmem>>, vector<2x32xf32>
      %c0_127 = arith.constant 0 : index
      %c0_128 = arith.constant 0 : index
      %193 = vector.load %arg10[%c0_127, %c0_128] : memref<2x32xf32, #tpu.memory_space<vmem>>, vector<2x32xf32>
      tpu.vector_store %arg10[%c0_127, %c0_128], %192 {strides = array<i32>} : memref<2x32xf32, #tpu.memory_space<vmem>>, vector<2x32xf32>,
      %c0_129 = arith.constant 0 : index
      %c288 = arith.constant 288 : index
      %194 = vector.load %arg2[%c0_129, %c288] : memref<2x384xf32, #tpu.memory_space<vmem>>, vector<2x32xf32>
      %c0_130 = arith.constant 0 : index
      %c0_131 = arith.constant 0 : index
      %195 = vector.load %arg11[%c0_130, %c0_131] : memref<2x32xf32, #tpu.memory_space<vmem>>, vector<2x32xf32>
      tpu.vector_store %arg11[%c0_130, %c0_131], %194 {strides = array<i32>} : memref<2x32xf32, #tpu.memory_space<vmem>>, vector<2x32xf32>,
      %cst_132 = arith.constant 0.000000e+00 : f32
      %196 = vector.broadcast %cst_132 : f32 to vector<2x8xf32>
      %c0_133 = arith.constant 0 : index
      %c0_134 = arith.constant 0 : index
      %197 = vector.load %arg12[%c0_133, %c0_134] : memref<2x8xf32, #tpu.memory_space<vmem>>, vector<2x8xf32>
      tpu.vector_store %arg12[%c0_133, %c0_134], %196 {strides = array<i32>} : memref<2x8xf32, #tpu.memory_space<vmem>>, vector<2x8xf32>,
    } else {
    }
    %c0 = arith.constant 0 : index
    %c0_1 = arith.constant 0 : index
    %c0_2 = arith.constant 0 : index
    %3 = vector.load %arg4[%c0, %c0_1, %c0_2] : memref<1x2x128xf32, #tpu.memory_space<vmem>>, vector<1x2x128xf32>
    %4 = vector.shape_cast %3 : vector<1x2x128xf32> to vector<2x128xf32>
    %5 = vector.extract_strided_slice %4 {offsets = [0, 0], sizes = [2, 16], strides = [1, 1]} : vector<2x128xf32> to vector<2x16xf32>
    %6 = vector.extract_strided_slice %4 {offsets = [0, 16], sizes = [2, 32], strides = [1, 1]} : vector<2x128xf32> to vector<2x32xf32>
    %7 = vector.extract_strided_slice %4 {offsets = [0, 48], sizes = [2, 32], strides = [1, 1]} : vector<2x128xf32> to vector<2x32xf32>
    %c0_3 = arith.constant 0 : index
    %c0_4 = arith.constant 0 : index
    %8 = vector.load %arg2[%c0_3, %c0_4] : memref<2x384xf32, #tpu.memory_space<vmem>>, vector<2x128xf32>
    %c0_5 = arith.constant 0 : index
    %c184 = arith.constant 184 : index
    %9 = vector.load %arg2[%c0_5, %c184] : memref<2x384xf32, #tpu.memory_space<vmem>>, vector<2x8xf32>
    %c0_6 = arith.constant 0 : index
    %c0_7 = arith.constant 0 : index
    %10 = vector.load %arg6[%c0_6, %c0_7] : memref<2x16xf32, #tpu.memory_space<vmem>>, vector<2x16xf32>
    %c0_8 = arith.constant 0 : index
    %c0_9 = arith.constant 0 : index
    %11 = vector.load %arg7[%c0_8, %c0_9] : memref<2x40xf32, #tpu.memory_space<vmem>>, vector<2x40xf32>
    %c0_10 = arith.constant 0 : index
    %c0_11 = arith.constant 0 : index
    %12 = vector.load %arg8[%c0_10, %c0_11] : memref<2x32xf32, #tpu.memory_space<vmem>>, vector<2x32xf32>
    %c0_12 = arith.constant 0 : index
    %c0_13 = arith.constant 0 : index
    %13 = vector.load %arg9[%c0_12, %c0_13] : memref<2x32xf32, #tpu.memory_space<vmem>>, vector<2x32xf32>
    %c0_14 = arith.constant 0 : index
    %c0_15 = arith.constant 0 : index
    %14 = vector.load %arg10[%c0_14, %c0_15] : memref<2x32xf32, #tpu.memory_space<vmem>>, vector<2x32xf32>
    %c0_16 = arith.constant 0 : index
    %c0_17 = arith.constant 0 : index
    %15 = vector.load %arg11[%c0_16, %c0_17] : memref<2x32xf32, #tpu.memory_space<vmem>>, vector<2x32xf32>
    %c0_18 = arith.constant 0 : index
    %c0_19 = arith.constant 0 : index
    %16 = vector.load %arg12[%c0_18, %c0_19] : memref<2x8xf32, #tpu.memory_space<vmem>>, vector<2x8xf32>
    %c0_20 = arith.constant 0 : index
    %c576 = arith.constant 576 : index
    %17 = vector.load %arg1[%c0_20, %c576] : memref<136x768xf32, #tpu.memory_space<vmem>>, vector<16x32xf32>
    %cst = arith.constant dense<0.000000e+00> : vector<2x32xf32>
    %18 = tpu.matmul %5, %17, %cst {dimension_numbers = #tpu.dot_dimension_numbers<[1], [0], [0], [1], [0, 0, 1, 1], [], []>} : vector<2x16xf32>, vector<16x32xf32>, vector<2x32xf32> -> vector<2x32xf32>
    %c128 = arith.constant 128 : index
    %c576_21 = arith.constant 576 : index
    %19 = vector.load %arg1[%c128, %c576_21] : memref<136x768xf32, #tpu.memory_space<vmem>>, vector<1x32xf32>
    %20 = vector.broadcast %19 : vector<1x32xf32> to vector<2x32xf32>
    %21 = arith.addf %18, %20 : vector<2x32xf32>
    %cst_22 = arith.constant 0.000000e+00 : f32
    %22 = vector.broadcast %cst_22 : f32 to vector<2x32xf32>
    %23 = arith.maximumf %21, %22 : vector<2x32xf32>
    %24 = arith.mulf %23, %6 : vector<2x32xf32>
    %c0_23 = arith.constant 0 : index
    %c608 = arith.constant 608 : index
    %25 = vector.load %arg1[%c0_23, %c608] : memref<136x768xf32, #tpu.memory_space<vmem>>, vector<32x32xf32>
    %cst_24 = arith.constant dense<0.000000e+00> : vector<2x32xf32>
    %26 = tpu.matmul %24, %25, %cst_24 {dimension_numbers = #tpu.dot_dimension_numbers<[1], [0], [0], [1], [0, 0, 1, 1], [], []>} : vector<2x32xf32>, vector<32x32xf32>, vector<2x32xf32> -> vector<2x32xf32>
    %c128_25 = arith.constant 128 : index
    %c608_26 = arith.constant 608 : index
    %27 = vector.load %arg1[%c128_25, %c608_26] : memref<136x768xf32, #tpu.memory_space<vmem>>, vector<1x32xf32>
    %28 = vector.broadcast %27 : vector<1x32xf32> to vector<2x32xf32>
    %29 = arith.addf %26, %28 : vector<2x32xf32>
    %cst_27 = arith.constant 0.000000e+00 : f32
    %30 = vector.broadcast %cst_27 : f32 to vector<2x32xf32>
    %31 = arith.maximumf %29, %30 : vector<2x32xf32>
    %32 = arith.mulf %31, %7 : vector<2x32xf32>
    %c0_28 = arith.constant 0 : index
    %c512 = arith.constant 512 : index
    %33 = vector.load %arg1[%c0_28, %c512] : memref<136x768xf32, #tpu.memory_space<vmem>>, vector<40x64xf32>
    %cst_29 = arith.constant dense<0.000000e+00> : vector<2x64xf32>
    %34 = tpu.matmul %11, %33, %cst_29 {dimension_numbers = #tpu.dot_dimension_numbers<[1], [0], [0], [1], [0, 0, 1, 1], [], []>} : vector<2x40xf32>, vector<40x64xf32>, vector<2x64xf32> -> vector<2x64xf32>
    %c40 = arith.constant 40 : index
    %c512_30 = arith.constant 512 : index
    %35 = vector.load %arg1[%c40, %c512_30] : memref<136x768xf32, #tpu.memory_space<vmem>>, vector<32x64xf32>
    %cst_31 = arith.constant dense<0.000000e+00> : vector<2x64xf32>
    %36 = tpu.matmul %32, %35, %cst_31 {dimension_numbers = #tpu.dot_dimension_numbers<[1], [0], [0], [1], [0, 0, 1, 1], [], []>} : vector<2x32xf32>, vector<32x64xf32>, vector<2x64xf32> -> vector<2x64xf32>
    %37 = arith.addf %34, %36 : vector<2x64xf32>
    %c72 = arith.constant 72 : index
    %c512_32 = arith.constant 512 : index
    %38 = vector.load %arg1[%c72, %c512_32] : memref<136x768xf32, #tpu.memory_space<vmem>>, vector<16x64xf32>
    %cst_33 = arith.constant dense<0.000000e+00> : vector<2x64xf32>
    %39 = tpu.matmul %10, %38, %cst_33 {dimension_numbers = #tpu.dot_dimension_numbers<[1], [0], [0], [1], [0, 0, 1, 1], [], []>} : vector<2x16xf32>, vector<16x64xf32>, vector<2x64xf32> -> vector<2x64xf32>
    %40 = arith.addf %37, %39 : vector<2x64xf32>
    %c128_34 = arith.constant 128 : index
    %c512_35 = arith.constant 512 : index
    %41 = vector.load %arg1[%c128_34, %c512_35] : memref<136x768xf32, #tpu.memory_space<vmem>>, vector<1x64xf32>
    %42 = vector.broadcast %41 : vector<1x64xf32> to vector<2x64xf32>
    %43 = arith.addf %40, %42 : vector<2x64xf32>
    %44 = vector.extract_strided_slice %43 {offsets = [0, 0], sizes = [2, 32], strides = [1, 1]} : vector<2x64xf32> to vector<2x32xf32>
    %cst_36 = arith.constant 5.000000e-01 : f32
    %45 = vector.broadcast %cst_36 : f32 to vector<2x32xf32>
    %46 = arith.mulf %45, %44 : vector<2x32xf32>
    %47 = math.tanh %46 : vector<2x32xf32>
    %cst_37 = arith.constant 1.000000e+00 : f32
    %48 = vector.broadcast %cst_37 : f32 to vector<2x32xf32>
    %49 = arith.addf %47, %48 : vector<2x32xf32>
    %cst_38 = arith.constant 5.000000e-01 : f32
    %50 = vector.broadcast %cst_38 : f32 to vector<2x32xf32>
    %51 = arith.mulf %50, %49 : vector<2x32xf32>
    %52 = vector.extract_strided_slice %51 {offsets = [0, 0], sizes = [2, 16], strides = [1, 1]} : vector<2x32xf32> to vector<2x16xf32>
    %53 = vector.extract_strided_slice %51 {offsets = [0, 16], sizes = [2, 16], strides = [1, 1]} : vector<2x32xf32> to vector<2x16xf32>
    %54 = vector.extract_strided_slice %43 {offsets = [0, 32], sizes = [2, 16], strides = [1, 1]} : vector<2x64xf32> to vector<2x16xf32>
    %55 = vector.extract_strided_slice %43 {offsets = [0, 48], sizes = [2, 16], strides = [1, 1]} : vector<2x64xf32> to vector<2x16xf32>
    %56 = arith.mulf %52, %55 : vector<2x16xf32>
    %57 = arith.addf %54, %56 : vector<2x16xf32>
    %58 = math.tanh %57 : vector<2x16xf32>
    %cst_39 = arith.constant 1.000000e+00 : f32
    %59 = vector.broadcast %cst_39 : f32 to vector<2x16xf32>
    %60 = arith.subf %59, %53 : vector<2x16xf32>
    %61 = arith.mulf %60, %58 : vector<2x16xf32>
    %62 = arith.mulf %53, %10 : vector<2x16xf32>
    %63 = arith.addf %61, %62 : vector<2x16xf32>
    %c0_40 = arith.constant 0 : index
    %c0_41 = arith.constant 0 : index
    %64 = vector.load %arg1[%c0_40, %c0_41] : memref<136x768xf32, #tpu.memory_space<vmem>>, vector<16x128xf32>
    %cst_42 = arith.constant dense<0.000000e+00> : vector<2x128xf32>
    %65 = tpu.matmul %63, %64, %cst_42 {dimension_numbers = #tpu.dot_dimension_numbers<[1], [0], [0], [1], [0, 0, 1, 1], [], []>} : vector<2x16xf32>, vector<16x128xf32>, vector<2x128xf32> -> vector<2x128xf32>
    %c128_43 = arith.constant 128 : index
    %c0_44 = arith.constant 0 : index
    %66 = vector.load %arg1[%c128_43, %c0_44] : memref<136x768xf32, #tpu.memory_space<vmem>>, vector<1x128xf32>
    %67 = vector.broadcast %66 : vector<1x128xf32> to vector<2x128xf32>
    %68 = arith.addf %65, %67 : vector<2x128xf32>
    %c0_45 = arith.constant 0 : index
    %c128_46 = arith.constant 128 : index
    %69 = vector.load %arg1[%c0_45, %c128_46] : memref<136x768xf32, #tpu.memory_space<vmem>>, vector<8x128xf32>
    %cst_47 = arith.constant dense<0.000000e+00> : vector<2x128xf32>
    %70 = tpu.matmul %16, %69, %cst_47 {dimension_numbers = #tpu.dot_dimension_numbers<[1], [0], [0], [1], [0, 0, 1, 1], [], []>} : vector<2x8xf32>, vector<8x128xf32>, vector<2x128xf32> -> vector<2x128xf32>
    %c128_48 = arith.constant 128 : index
    %c128_49 = arith.constant 128 : index
    %71 = vector.load %arg1[%c128_48, %c128_49] : memref<136x768xf32, #tpu.memory_space<vmem>>, vector<1x128xf32>
    %72 = vector.broadcast %71 : vector<1x128xf32> to vector<2x128xf32>
    %73 = arith.addf %70, %72 : vector<2x128xf32>
    %74 = arith.addf %68, %8 : vector<2x128xf32>
    %75 = arith.addf %74, %73 : vector<2x128xf32>
    %76 = math.tanh %75 : vector<2x128xf32>
    %c0_50 = arith.constant 0 : index
    %c704 = arith.constant 704 : index
    %77 = vector.load %arg1[%c0_50, %c704] : memref<136x768xf32, #tpu.memory_space<vmem>>, vector<128x8xf32>
    %cst_51 = arith.constant dense<0.000000e+00> : vector<2x8xf32>
    %78 = tpu.matmul %76, %77, %cst_51 {dimension_numbers = #tpu.dot_dimension_numbers<[1], [0], [0], [1], [0, 0, 1, 1], [], []>} : vector<2x128xf32>, vector<128x8xf32>, vector<2x8xf32> -> vector<2x8xf32>
    %79 = arith.mulf %78, %9 : vector<2x8xf32>
    %cst_52 = arith.constant dense<0xFF800000> : vector<2xf32>
    %80 = vector.multi_reduction <maximumf>, %79, %cst_52 [1] : vector<2x8xf32> to vector<2xf32>
    %81 = vector.shape_cast %80 : vector<2xf32> to vector<2x1xf32>
    %82 = vector.broadcast %81 : vector<2x1xf32> to vector<2x8xf32>
    %83 = arith.subf %79, %82 : vector<2x8xf32>
    %84 = math.exp %83 : vector<2x8xf32>
    %cst_53 = arith.constant dense<0.000000e+00> : vector<2xf32>
    %85 = vector.multi_reduction <add>, %84, %cst_53 [1] : vector<2x8xf32> to vector<2xf32>
    %86 = vector.shape_cast %85 : vector<2xf32> to vector<2x1xf32>
    %87 = vector.broadcast %86 : vector<2x1xf32> to vector<2x8xf32>
    %88 = arith.divf %84, %87 : vector<2x8xf32>
    %89 = vector.shape_cast %88 : vector<2x8xf32> to vector<2x8x1xf32>
    %c0_54 = arith.constant 0 : index
    %c0_55 = arith.constant 0 : index
    %c0_56 = arith.constant 0 : index
    %90 = vector.load %arg3[%c0_54, %c0_55, %c0_56] : memref<2x8x40xf32, #tpu.memory_space<vmem>>, vector<2x8x40xf32>
    %91 = vector.broadcast %89 : vector<2x8x1xf32> to vector<2x8x40xf32>
    %92 = arith.mulf %91, %90 : vector<2x8x40xf32>
    %cst_57 = arith.constant dense<0.000000e+00> : vector<2x40xf32>
    %93 = vector.multi_reduction <add>, %92, %cst_57 [1] : vector<2x8x40xf32> to vector<2x40xf32>
    %c0_58 = arith.constant 0 : index
    %c640 = arith.constant 640 : index
    %94 = vector.load %arg1[%c0_58, %c640] : memref<136x768xf32, #tpu.memory_space<vmem>>, vector<40x32xf32>
    %cst_59 = arith.constant dense<0.000000e+00> : vector<2x32xf32>
    %95 = tpu.matmul %93, %94, %cst_59 {dimension_numbers = #tpu.dot_dimension_numbers<[1], [0], [0], [1], [0, 0, 1, 1], [], []>} : vector<2x40xf32>, vector<40x32xf32>, vector<2x32xf32> -> vector<2x32xf32>
    %c40_60 = arith.constant 40 : index
    %c640_61 = arith.constant 640 : index
    %96 = vector.load %arg1[%c40_60, %c640_61] : memref<136x768xf32, #tpu.memory_space<vmem>>, vector<16x32xf32>
    %cst_62 = arith.constant dense<0.000000e+00> : vector<2x32xf32>
    %97 = tpu.matmul %63, %96, %cst_62 {dimension_numbers = #tpu.dot_dimension_numbers<[1], [0], [0], [1], [0, 0, 1, 1], [], []>} : vector<2x16xf32>, vector<16x32xf32>, vector<2x32xf32> -> vector<2x32xf32>
    %98 = arith.addf %95, %97 : vector<2x32xf32>
    %c128_63 = arith.constant 128 : index
    %c640_64 = arith.constant 640 : index
    %99 = vector.load %arg1[%c128_63, %c640_64] : memref<136x768xf32, #tpu.memory_space<vmem>>, vector<1x32xf32>
    %100 = vector.broadcast %99 : vector<1x32xf32> to vector<2x32xf32>
    %101 = arith.addf %98, %100 : vector<2x32xf32>
    %c0_65 = arith.constant 0 : index
    %c256 = arith.constant 256 : index
    %102 = vector.load %arg1[%c0_65, %c256] : memref<136x768xf32, #tpu.memory_space<vmem>>, vector<32x128xf32>
    %cst_66 = arith.constant dense<0.000000e+00> : vector<2x128xf32>
    %103 = tpu.matmul %101, %102, %cst_66 {dimension_numbers = #tpu.dot_dimension_numbers<[1], [0], [0], [1], [0, 0, 1, 1], [], []>} : vector<2x32xf32>, vector<32x128xf32>, vector<2x128xf32> -> vector<2x128xf32>
    %c32 = arith.constant 32 : index
    %c256_67 = arith.constant 256 : index
    %104 = vector.load %arg1[%c32, %c256_67] : memref<136x768xf32, #tpu.memory_space<vmem>>, vector<32x128xf32>
    %cst_68 = arith.constant dense<0.000000e+00> : vector<2x128xf32>
    %105 = tpu.matmul %12, %104, %cst_68 {dimension_numbers = #tpu.dot_dimension_numbers<[1], [0], [0], [1], [0, 0, 1, 1], [], []>} : vector<2x32xf32>, vector<32x128xf32>, vector<2x128xf32> -> vector<2x128xf32>
    %106 = arith.addf %103, %105 : vector<2x128xf32>
    %c128_69 = arith.constant 128 : index
    %c256_70 = arith.constant 256 : index
    %107 = vector.load %arg1[%c128_69, %c256_70] : memref<136x768xf32, #tpu.memory_space<vmem>>, vector<1x128xf32>
    %108 = vector.broadcast %107 : vector<1x128xf32> to vector<2x128xf32>
    %109 = arith.addf %106, %108 : vector<2x128xf32>
    %cst_71 = arith.constant 5.000000e-01 : f32
    %110 = vector.broadcast %cst_71 : f32 to vector<2x128xf32>
    %111 = arith.mulf %110, %109 : vector<2x128xf32>
    %112 = math.tanh %111 : vector<2x128xf32>
    %cst_72 = arith.constant 1.000000e+00 : f32
    %113 = vector.broadcast %cst_72 : f32 to vector<2x128xf32>
    %114 = arith.addf %112, %113 : vector<2x128xf32>
    %cst_73 = arith.constant 5.000000e-01 : f32
    %115 = vector.broadcast %cst_73 : f32 to vector<2x128xf32>
    %116 = arith.mulf %115, %114 : vector<2x128xf32>
    %117 = math.tanh %109 : vector<2x128xf32>
    %118 = vector.extract_strided_slice %116 {offsets = [0, 32], sizes = [2, 32], strides = [1, 1]} : vector<2x128xf32> to vector<2x32xf32>
    %119 = arith.mulf %118, %13 : vector<2x32xf32>
    %120 = vector.extract_strided_slice %116 {offsets = [0, 0], sizes = [2, 32], strides = [1, 1]} : vector<2x128xf32> to vector<2x32xf32>
    %121 = vector.extract_strided_slice %117 {offsets = [0, 64], sizes = [2, 32], strides = [1, 1]} : vector<2x128xf32> to vector<2x32xf32>
    %122 = arith.mulf %120, %121 : vector<2x32xf32>
    %123 = arith.addf %119, %122 : vector<2x32xf32>
    %124 = vector.extract_strided_slice %116 {offsets = [0, 96], sizes = [2, 32], strides = [1, 1]} : vector<2x128xf32> to vector<2x32xf32>
    %125 = math.tanh %123 : vector<2x32xf32>
    %126 = arith.mulf %124, %125 : vector<2x32xf32>
    %127 = arith.addf %101, %126 : vector<2x32xf32>
    %c0_74 = arith.constant 0 : index
    %c384 = arith.constant 384 : index
    %128 = vector.load %arg1[%c0_74, %c384] : memref<136x768xf32, #tpu.memory_space<vmem>>, vector<32x128xf32>
    %cst_75 = arith.constant dense<0.000000e+00> : vector<2x128xf32>
    %129 = tpu.matmul %127, %128, %cst_75 {dimension_numbers = #tpu.dot_dimension_numbers<[1], [0], [0], [1], [0, 0, 1, 1], [], []>} : vector<2x32xf32>, vector<32x128xf32>, vector<2x128xf32> -> vector<2x128xf32>
    %c32_76 = arith.constant 32 : index
    %c384_77 = arith.constant 384 : index
    %130 = vector.load %arg1[%c32_76, %c384_77] : memref<136x768xf32, #tpu.memory_space<vmem>>, vector<32x128xf32>
    %cst_78 = arith.constant dense<0.000000e+00> : vector<2x128xf32>
    %131 = tpu.matmul %14, %130, %cst_78 {dimension_numbers = #tpu.dot_dimension_numbers<[1], [0], [0], [1], [0, 0, 1, 1], [], []>} : vector<2x32xf32>, vector<32x128xf32>, vector<2x128xf32> -> vector<2x128xf32>
    %132 = arith.addf %129, %131 : vector<2x128xf32>
    %c128_79 = arith.constant 128 : index
    %c384_80 = arith.constant 384 : index
    %133 = vector.load %arg1[%c128_79, %c384_80] : memref<136x768xf32, #tpu.memory_space<vmem>>, vector<1x128xf32>
    %134 = vector.broadcast %133 : vector<1x128xf32> to vector<2x128xf32>
    %135 = arith.addf %132, %134 : vector<2x128xf32>
    %cst_81 = arith.constant 5.000000e-01 : f32
    %136 = vector.broadcast %cst_81 : f32 to vector<2x128xf32>
    %137 = arith.mulf %136, %135 : vector<2x128xf32>
    %138 = math.tanh %137 : vector<2x128xf32>
    %cst_82 = arith.constant 1.000000e+00 : f32
    %139 = vector.broadcast %cst_82 : f32 to vector<2x128xf32>
    %140 = arith.addf %138, %139 : vector<2x128xf32>
    %cst_83 = arith.constant 5.000000e-01 : f32
    %141 = vector.broadcast %cst_83 : f32 to vector<2x128xf32>
    %142 = arith.mulf %141, %140 : vector<2x128xf32>
    %143 = math.tanh %135 : vector<2x128xf32>
    %144 = vector.extract_strided_slice %142 {offsets = [0, 32], sizes = [2, 32], strides = [1, 1]} : vector<2x128xf32> to vector<2x32xf32>
    %145 = arith.mulf %144, %15 : vector<2x32xf32>
    %146 = vector.extract_strided_slice %142 {offsets = [0, 0], sizes = [2, 32], strides = [1, 1]} : vector<2x128xf32> to vector<2x32xf32>
    %147 = vector.extract_strided_slice %143 {offsets = [0, 64], sizes = [2, 32], strides = [1, 1]} : vector<2x128xf32> to vector<2x32xf32>
    %148 = arith.mulf %146, %147 : vector<2x32xf32>
    %149 = arith.addf %145, %148 : vector<2x32xf32>
    %150 = vector.extract_strided_slice %142 {offsets = [0, 96], sizes = [2, 32], strides = [1, 1]} : vector<2x128xf32> to vector<2x32xf32>
    %151 = math.tanh %149 : vector<2x32xf32>
    %152 = arith.mulf %150, %151 : vector<2x32xf32>
    %153 = arith.addf %127, %152 : vector<2x32xf32>
    %c0_84 = arith.constant 0 : index
    %c672 = arith.constant 672 : index
    %154 = vector.load %arg1[%c0_84, %c672] : memref<136x768xf32, #tpu.memory_space<vmem>>, vector<32x17xf32>
    %cst_85 = arith.constant dense<0.000000e+00> : vector<2x17xf32>
    %155 = tpu.matmul %153, %154, %cst_85 {dimension_numbers = #tpu.dot_dimension_numbers<[1], [0], [0], [1], [0, 0, 1, 1], [], []>} : vector<2x32xf32>, vector<32x17xf32>, vector<2x17xf32> -> vector<2x17xf32>
    %c32_86 = arith.constant 32 : index
    %c672_87 = arith.constant 672 : index
    %156 = vector.load %arg1[%c32_86, %c672_87] : memref<136x768xf32, #tpu.memory_space<vmem>>, vector<40x17xf32>
    %cst_88 = arith.constant dense<0.000000e+00> : vector<2x17xf32>
    %157 = tpu.matmul %93, %156, %cst_88 {dimension_numbers = #tpu.dot_dimension_numbers<[1], [0], [0], [1], [0, 0, 1, 1], [], []>} : vector<2x40xf32>, vector<40x17xf32>, vector<2x17xf32> -> vector<2x17xf32>
    %158 = arith.addf %155, %157 : vector<2x17xf32>
    %c128_89 = arith.constant 128 : index
    %c672_90 = arith.constant 672 : index
    %159 = vector.load %arg1[%c128_89, %c672_90] : memref<136x768xf32, #tpu.memory_space<vmem>>, vector<1x17xf32>
    %160 = vector.broadcast %159 : vector<1x17xf32> to vector<2x17xf32>
    %161 = arith.addf %158, %160 : vector<2x17xf32>
    %162 = vector.extract_strided_slice %161 {offsets = [0, 0], sizes = [2, 16], strides = [1, 1]} : vector<2x17xf32> to vector<2x16xf32>
    %163 = vector.extract_strided_slice %161 {offsets = [0, 16], sizes = [2, 1], strides = [1, 1]} : vector<2x17xf32> to vector<2x1xf32>
    %cst_91 = arith.constant 5.000000e-01 : f32
    %164 = vector.broadcast %cst_91 : f32 to vector<2x1xf32>
    %165 = arith.mulf %164, %163 : vector<2x1xf32>
    %166 = math.tanh %165 : vector<2x1xf32>
    %cst_92 = arith.constant 1.000000e+00 : f32
    %167 = vector.broadcast %cst_92 : f32 to vector<2x1xf32>
    %168 = arith.addf %166, %167 : vector<2x1xf32>
    %cst_93 = arith.constant 5.000000e-01 : f32
    %169 = vector.broadcast %cst_93 : f32 to vector<2x1xf32>
    %170 = arith.mulf %169, %168 : vector<2x1xf32>
    %c0_94 = arith.constant 0 : index
    %c0_95 = arith.constant 0 : index
    %171 = vector.load %arg6[%c0_94, %c0_95] : memref<2x16xf32, #tpu.memory_space<vmem>>, vector<2x16xf32>
    tpu.vector_store %arg6[%c0_94, %c0_95], %63 {strides = array<i32>} : memref<2x16xf32, #tpu.memory_space<vmem>>, vector<2x16xf32>,
    %c0_96 = arith.constant 0 : index
    %c0_97 = arith.constant 0 : index
    %172 = vector.load %arg7[%c0_96, %c0_97] : memref<2x40xf32, #tpu.memory_space<vmem>>, vector<2x40xf32>
    tpu.vector_store %arg7[%c0_96, %c0_97], %93 {strides = array<i32>} : memref<2x40xf32, #tpu.memory_space<vmem>>, vector<2x40xf32>,
    %c0_98 = arith.constant 0 : index
    %c0_99 = arith.constant 0 : index
    %173 = vector.load %arg8[%c0_98, %c0_99] : memref<2x32xf32, #tpu.memory_space<vmem>>, vector<2x32xf32>
    tpu.vector_store %arg8[%c0_98, %c0_99], %126 {strides = array<i32>} : memref<2x32xf32, #tpu.memory_space<vmem>>, vector<2x32xf32>,
    %c0_100 = arith.constant 0 : index
    %c0_101 = arith.constant 0 : index
    %174 = vector.load %arg9[%c0_100, %c0_101] : memref<2x32xf32, #tpu.memory_space<vmem>>, vector<2x32xf32>
    tpu.vector_store %arg9[%c0_100, %c0_101], %123 {strides = array<i32>} : memref<2x32xf32, #tpu.memory_space<vmem>>, vector<2x32xf32>,
    %c0_102 = arith.constant 0 : index
    %c0_103 = arith.constant 0 : index
    %175 = vector.load %arg10[%c0_102, %c0_103] : memref<2x32xf32, #tpu.memory_space<vmem>>, vector<2x32xf32>
    tpu.vector_store %arg10[%c0_102, %c0_103], %152 {strides = array<i32>} : memref<2x32xf32, #tpu.memory_space<vmem>>, vector<2x32xf32>,
    %c0_104 = arith.constant 0 : index
    %c0_105 = arith.constant 0 : index
    %176 = vector.load %arg11[%c0_104, %c0_105] : memref<2x32xf32, #tpu.memory_space<vmem>>, vector<2x32xf32>
    tpu.vector_store %arg11[%c0_104, %c0_105], %149 {strides = array<i32>} : memref<2x32xf32, #tpu.memory_space<vmem>>, vector<2x32xf32>,
    %177 = arith.addf %16, %88 : vector<2x8xf32>
    %c0_106 = arith.constant 0 : index
    %c0_107 = arith.constant 0 : index
    %178 = vector.load %arg12[%c0_106, %c0_107] : memref<2x8xf32, #tpu.memory_space<vmem>>, vector<2x8xf32>
    tpu.vector_store %arg12[%c0_106, %c0_107], %177 {strides = array<i32>} : memref<2x8xf32, #tpu.memory_space<vmem>>, vector<2x8xf32>,
    %cst_108 = arith.constant 0.000000e+00 : f32
    %179 = vector.broadcast %cst_108 : f32 to vector<2x47xf32>
    %180 = tpu.concatenate %162, %88, %63, %126, %152, %123, %149, %93, %170, %179 in 1 : vector<2x16xf32>, vector<2x8xf32>, vector<2x16xf32>, vector<2x32xf32>, vector<2x32xf32>, vector<2x32xf32>, vector<2x32xf32>, vector<2x40xf32>, vector<2x1xf32>, vector<2x47xf32> -> vector<2x256xf32>
    %c0_109 = arith.constant 0 : index
    %c0_110 = arith.constant 0 : index
    %c0_111 = arith.constant 0 : index
    %181 = vector.load %arg5[%c0_109, %c0_110, %c0_111] : memref<1x2x256xf32, #tpu.memory_space<vmem>>, vector<1x2x256xf32>
    %182 = vector.shape_cast %181 : vector<1x2x256xf32> to vector<2x256xf32>
    %183 = vector.shape_cast %180 : vector<2x256xf32> to vector<1x2x256xf32>
    tpu.vector_store %arg5[%c0_109, %c0_110, %c0_111], %183 {strides = array<i32>} : memref<1x2x256xf32, #tpu.memory_space<vmem>>, vector<1x2x256xf32>,
    return
  }
  func.func @transform_0(%arg0: i32) -> (i32, i32) {
    %c0_i32 = arith.constant 0 : i32
    %c0_i32_0 = arith.constant 0 : i32
    %c0_i32_1 = arith.constant 0 : i32
    return %c0_i32, %c0_i32_0 : i32, i32
  }
  func.func @transform_1(%arg0: i32) -> (i32, i32) {
    %c0_i32 = arith.constant 0 : i32
    %c0_i32_0 = arith.constant 0 : i32
    %c0_i32_1 = arith.constant 0 : i32
    return %c0_i32, %c0_i32_0 : i32, i32
  }
  func.func @transform_2(%arg0: i32) -> (i32, i32, i32) {
    %c0_i32 = arith.constant 0 : i32
    %c0_i32_0 = arith.constant 0 : i32
    %c0_i32_1 = arith.constant 0 : i32
    %c0_i32_2 = arith.constant 0 : i32
    return %c0_i32, %c0_i32_0, %c0_i32_1 : i32, i32, i32
  }
  func.func @transform_3(%arg0: i32) -> (i32, i32, i32) {
    %c0_i32 = arith.constant 0 : i32
    %c0_i32_0 = arith.constant 0 : i32
    %c0_i32_1 = arith.constant 0 : i32
    return %arg0, %c0_i32, %c0_i32_0 : i32, i32, i32
  }
  func.func @transform_4(%arg0: i32) -> (i32, i32, i32) {
    %c0_i32 = arith.constant 0 : i32
    %c0_i32_0 = arith.constant 0 : i32
    %c0_i32_1 = arith.constant 0 : i32
    return %arg0, %c0_i32, %c0_i32_0 : i32, i32, i32
  }
}

</mosaic_0001>

<llo_original>
// kernel: tpu_custom_call.1
$region0: #{tpu_custom_call.1}
  #allocation0 [shape = 'u32[]', space=smem, size = 0x4, offset = 0x4, fixed_abs, tag = 'smem constant byte address 0x4 - core index']
  #allocation1 [shape = 'u32[144,128]{1,0:T(1,128)}', space=vmem, size = 0x12000, scoped, tag = 'internal scratch']
  #allocation2 [shape = 'f32[2,16]{1,0:T(2,128)}', space=vmem, size = 0x400, scoped, tag = 'scratch operand']
  #allocation3 [shape = 'f32[2,40]{1,0:T(2,128)}', space=vmem, size = 0x400, scoped, tag = 'scratch operand']
  #allocation4 [shape = 'f32[2,32]{1,0:T(2,128)}', space=vmem, size = 0x400, scoped, tag = 'scratch operand']
  #allocation5 [shape = 'f32[2,32]{1,0:T(2,128)}', space=vmem, size = 0x400, scoped, tag = 'scratch operand']
  #allocation6 [shape = 'f32[2,32]{1,0:T(2,128)}', space=vmem, size = 0x400, scoped, tag = 'scratch operand']
  #allocation7 [shape = 'f32[2,32]{1,0:T(2,128)}', space=vmem, size = 0x400, scoped, tag = 'scratch operand']
  #allocation8 [shape = 'f32[2,8]{1,0:T(2,128)}', space=vmem, size = 0x400, scoped, tag = 'scratch operand']
  %s0 = inlined_call_operand.hbm [shape: f32[136,768], index: 0, kind: input, shape index: {}]
  %s1 = inlined_call_operand.hbm [shape: f32[2,384], index: 1, kind: input, shape index: {}]
  %s2 = inlined_call_operand.hbm [shape: f32[2,8,40], index: 2, kind: input, shape index: {}]
  %s3 = inlined_call_operand.vmem [shape: f32[4,2,128], index: 3, kind: input, shape index: {}]
  %s4 = inlined_call_operand.hbm [shape: f32[4,2,256], index: 4, kind: output, shape index: {}]
  %s5 = sld [smem:[#allocation0]]
  $region65: #{tpu_custom_call.1} parent=0
    _
  %s7 = ssub.s32 1, %s5
  %s8 = scalar_select 0, %s7, %s5
  $region1: #{tpu_custom_call.1} parent=0
    #allocation9 [shape = 'u8[417792]{0}', space=vmem, size = 0x66000, scoped, tag = 'input window, operand 0, single buffered']
    #allocation10 [shape = 's32[2]{0}', space=sflag, size = 0x8, scoped, tag = 'scoped memory for tpu_custom_call.1']
    #allocation11 [shape = 's32[2]{0}', space=sflag, size = 0x8, scoped, tag = 'scoped memory for tpu_custom_call.1']
    #allocation12 [shape = 'u8[3072]{0}', space=vmem, size = 0xc00, scoped, tag = 'input window, operand 1, single buffered']
    #allocation13 [shape = 's32[1]{0}', space=sflag, size = 0x4, scoped, tag = 'scoped memory for tpu_custom_call.1']
    #allocation14 [shape = 'u8[8192]{0}', space=vmem, size = 0x2000, scoped, tag = 'input window, operand 2, single buffered']
    #allocation15 [shape = 'u8[4096]{0}', space=vmem, size = 0x1000, scoped, tag = 'output window, operand 0']
    %9 = vsyncpa [#allocation10], 0
    %10 = vsyncpa [#allocation13], 0
    %11 = vsyncpa [#allocation11], 0
    %s12 = scalar_lea.sflag [#allocation11], 1
    %13 = vsyncpa %s12, 0
    loop: start=0, step=1, limit=6
    $region2: #{tpu_custom_call.1} parent=1 // loop_pre_header
      _
    $region3: #{tpu_custom_call.1} parent=1 // loop_header
      %s15 = sphi 0, %s19
      %p16 = scmp.ge.s32.totalorder %s15, 6
      %s23 = sphi 0, %s23
      %s25 = sphi 0, %s23
      %s26 = sphi 0, %s25
      %s40 = sphi 0, %s26
      %s44 = sphi 0, %s44
      %s46 = sphi 0, %s44
      %s47 = sphi 0, %s46
      %s61 = sphi 0, %s47
      %s65 = sphi 0, %s65
      %s67 = sphi 0, %s65
      %s68 = sphi 0, %s67
      %s82 = sphi 0, %s68
      %s88 = sphi 0, %s90
      %s91 = sphi 0, %s88
      %s92 = sphi 0, %s91
      %s108 = sphi 0, %s92
      %s114 = sphi 0, %s116
      %s117 = sphi 0, %s114
      %s118 = sphi 0, %s117
      %s134 = sphi 0, %s118
    $region4: #{tpu_custom_call.1} parent=1 // loop_header_branch
      %18 = sbr.rel (%p16) target = $region8
    $region5: #{tpu_custom_call.1} parent=1 // loop_body
      %s20 = ssub.s32 %s15, 1
      %s21 = ssub.s32 %s15, 2
      %s22 = sadd.s32 %s15, 1
      %s24 = sadd.s32 %s23, 1
      %p27 = scmp.eq.s32.totalorder %s15, 3
      %p28 = scmp.ne.s32.totalorder %s23, %s25
      %p29 = scmp.eq.s32.totalorder %s15, 0
      %p30 = por %p28, %p29
      %p31 = scmp.ne.s32.totalorder %s23, %s25
      %p32 = scmp.eq.s32.totalorder %s20, 3
      %p33 = por %p31, %p32
      %p34 = scmp.ne.s32.totalorder %s25, %s26
      %p35 = scmp.eq.s32.totalorder %s20, 0
      %p36 = por %p34, %p35
      %p37 = scmp.ne.s32.totalorder %s25, %s26
      %p38 = scmp.eq.s32.totalorder %s21, 3
      %p39 = por %p37, %p38
      %p41 = scmp.ne.s32.totalorder %s26, %s40
      %p42 = scmp.eq.s32.totalorder %s21, 0
      %p43 = por %p41, %p42
      %s45 = sadd.s32 %s44, 1
      %p48 = scmp.eq.s32.totalorder %s15, 3
      %p49 = scmp.ne.s32.totalorder %s44, %s46
      %p50 = scmp.eq.s32.totalorder %s15, 0
      %p51 = por %p49, %p50
      %p52 = scmp.ne.s32.totalorder %s44, %s46
      %p53 = scmp.eq.s32.totalorder %s20, 3
      %p54 = por %p52, %p53
      %p55 = scmp.ne.s32.totalorder %s46, %s47
      %p56 = scmp.eq.s32.totalorder %s20, 0
      %p57 = por %p55, %p56
      %p58 = scmp.ne.s32.totalorder %s46, %s47
      %p59 = scmp.eq.s32.totalorder %s21, 3
      %p60 = por %p58, %p59
      %p62 = scmp.ne.s32.totalorder %s47, %s61
      %p63 = scmp.eq.s32.totalorder %s21, 0
      %p64 = por %p62, %p63
      %s66 = sadd.s32 %s65, 1
      %p69 = scmp.eq.s32.totalorder %s15, 3
      %p70 = scmp.ne.s32.totalorder %s65, %s67
      %p71 = scmp.eq.s32.totalorder %s15, 0
      %p72 = por %p70, %p71
      %p73 = scmp.ne.s32.totalorder %s65, %s67
      %p74 = scmp.eq.s32.totalorder %s20, 3
      %p75 = por %p73, %p74
      %p76 = scmp.ne.s32.totalorder %s67, %s68
      %p77 = scmp.eq.s32.totalorder %s20, 0
      %p78 = por %p76, %p77
      %p79 = scmp.ne.s32.totalorder %s67, %s68
      %p80 = scmp.eq.s32.totalorder %s21, 3
      %p81 = por %p79, %p80
      %p83 = scmp.ne.s32.totalorder %s68, %s82
      %p84 = scmp.eq.s32.totalorder %s21, 0
      %p85 = por %p83, %p84
      %s86 = ssub.s32 %s15, %s22
      %p87 = scmp.eq.s32.totalorder %s86, 0
      %s89 = sadd.s32 %s88, 1
      %s90 = scalar_select %p87, %s88, %s89
      %p93 = pneg %p87
      %p94 = scmp.eq.s32.totalorder %s15, 3
      %p95 = por %p93, %p94
      %p96 = scmp.ne.s32.totalorder %s88, %s91
      %p97 = scmp.eq.s32.totalorder %s15, 0
      %p98 = por %p96, %p97
      %p99 = scmp.ne.s32.totalorder %s88, %s91
      %p100 = scmp.eq.s32.totalorder %s20, 3
      %p101 = por %p99, %p100
      %p102 = scmp.ne.s32.totalorder %s91, %s92
      %p103 = scmp.eq.s32.totalorder %s20, 0
      %p104 = por %p102, %p103
      %p105 = scmp.ne.s32.totalorder %s91, %s92
      %p106 = scmp.eq.s32.totalorder %s21, 3
      %p107 = por %p105, %p106
      %p109 = scmp.ne.s32.totalorder %s92, %s108
      %p110 = scmp.eq.s32.totalorder %s21, 0
      %p111 = por %p109, %p110
      %s112 = ssub.s32 %s15, %s22
      %p113 = scmp.eq.s32.totalorder %s112, 0
      %s115 = sadd.s32 %s114, 1
      %s116 = scalar_select %p113, %s114, %s115
      %p119 = pneg %p113
      %p120 = scmp.eq.s32.totalorder %s15, 3
      %p121 = por %p119, %p120
      %p122 = scmp.ne.s32.totalorder %s114, %s117
      %p123 = scmp.eq.s32.totalorder %s15, 0
      %p124 = por %p122, %p123
      %p125 = scmp.ne.s32.totalorder %s114, %s117
      %p126 = scmp.eq.s32.totalorder %s20, 3
      %p127 = por %p125, %p126
      %p128 = scmp.ne.s32.totalorder %s117, %s118
      %p129 = scmp.eq.s32.totalorder %s20, 0
      %p130 = por %p128, %p129
      %p131 = scmp.ne.s32.totalorder %s117, %s118
      %p132 = scmp.eq.s32.totalorder %s21, 3
      %p133 = por %p131, %p132
      %p135 = scmp.ne.s32.totalorder %s118, %s134
      %p136 = scmp.eq.s32.totalorder %s21, 0
      %p137 = por %p135, %p136
      %p138 = scmp.le.s32.totalorder 1, %s15
      %p139 = scmp.lt.s32.totalorder %s15, 5
      %p140 = pnand %p138, %p139
      %p141 = pneg %p140
      // Predicated region
      $region9: #{tpu_custom_call.1} parent=5 // pred_check
        _
      $region10: #{tpu_custom_call.1} parent=5 // pred_check_branch
        %143 = sbr.rel (%p140) target = $region12
      $region11: #{tpu_custom_call.1} parent=5 // pred_region
        %s144 = ssub.s32 %s15, 1
        // Predicated region
        $region13: #{tpu_custom_call.1} parent=11 // pred_check
          %p145 = pneg %p36
        $region14: #{tpu_custom_call.1} parent=11 // pred_check_branch
          %147 = sbr.rel (%p145) target = $region16
        $region15: #{tpu_custom_call.1} parent=11 // pred_region
          %s149 = ssub.s32 13056, 13056
          %150 = vsyncadd [#allocation10], %s149
          %s151 = sshll.u32 [#allocation9], 4
          %s152 = int_to_ptr.vmem [resolvable:$true] %s151
          %157 = dma.hbm_to_vmem [thread:$0]  %s0, 13056, %s152, [#allocation10], 768, 768, 48
        $region16: #{tpu_custom_call.1} parent=11 // pred_fallthru
          _
        // Predicated region
        $region17: #{tpu_custom_call.1} parent=11 // pred_check
          %p158 = pneg %p57
        $region18: #{tpu_custom_call.1} parent=11 // pred_check_branch
          %160 = sbr.rel (%p158) target = $region20
        $region19: #{tpu_custom_call.1} parent=11 // pred_region
          %s162 = ssub.s32 96, 96
          %163 = vsyncadd [#allocation13], %s162
          %s165 = sshll.u32 [#allocation12], 4
          %s166 = int_to_ptr.vmem [resolvable:$true] %s165
          %168 = dma.hbm_to_vmem [thread:$0]  %s1, 96, %s166, [#allocation13]
        $region20: #{tpu_custom_call.1} parent=11 // pred_fallthru
          _
        // Predicated region
        $region21: #{tpu_custom_call.1} parent=11 // pred_check
          %p169 = pneg %p78
        $region22: #{tpu_custom_call.1} parent=11 // pred_check_branch
          %171 = sbr.rel (%p169) target = $region24
        $region23: #{tpu_custom_call.1} parent=11 // pred_region
          %s173 = ssub.s32 256, 256
          %174 = vsyncadd [#allocation13], %s173
          %s175 = sshll.u32 [#allocation14], 4
          %s176 = int_to_ptr.vmem [resolvable:$true] %s175
          %181 = dma.hbm_to_vmem [thread:$0]  %s2, 256, %s176, [#allocation13], 128, 128, 8
        $region24: #{tpu_custom_call.1} parent=11 // pred_fallthru
          _
      $region12: #{tpu_custom_call.1} parent=5 // pred_fallthru
        _
      %p182 = scmp.lt.s32.totalorder %s15, 4
      // Predicated region
      $region25: #{tpu_custom_call.1} parent=5 // pred_check
        %p183 = pneg %p182
      $region26: #{tpu_custom_call.1} parent=5 // pred_check_branch
        %185 = sbr.rel (%p183) target = $region28
      $region27: #{tpu_custom_call.1} parent=5 // pred_region
        // Predicated region
        $region29: #{tpu_custom_call.1} parent=27 // pred_check
          %p186 = pneg %p98
        $region30: #{tpu_custom_call.1} parent=27 // pred_check_branch
          %188 = sbr.rel (%p186) target = $region32
        $region31: #{tpu_custom_call.1} parent=27 // pred_region
          %p189 = scmp.lt.s32.totalorder %s15, 3
          %s190 = scalar_select %p189, %s15, 3
          %s191 = smul.addr %s190, 2
          %s192 = scalar_lea.vmem %s3, %s191
        $region32: #{tpu_custom_call.1} parent=27 // pred_fallthru
          _
      $region28: #{tpu_custom_call.1} parent=5 // pred_fallthru
        _
      %p193 = scmp.le.s32.totalorder 1, %s15
      %p194 = scmp.lt.s32.totalorder %s15, 5
      %p195 = pnand %p193, %p194
      %p196 = pneg %p195
      // Predicated region
      $region33: #{tpu_custom_call.1} parent=5 // pred_check
        _
      $region34: #{tpu_custom_call.1} parent=5 // pred_check_branch
        %198 = sbr.rel (%p195) target = $region36
      $region35: #{tpu_custom_call.1} parent=5 // pred_region
        %s199 = ssub.s32 %s15, 1
        // Predicated region
        $region37: #{tpu_custom_call.1} parent=35 // pred_check
          %p200 = pneg %p36
        $region38: #{tpu_custom_call.1} parent=35 // pred_check_branch
          %202 = sbr.rel (%p200) target = $region40
        $region39: #{tpu_custom_call.1} parent=35 // pred_region
          %203 = dma.done [#allocation10], 13056
        $region40: #{tpu_custom_call.1} parent=35 // pred_fallthru
          _
        // Predicated region
        $region41: #{tpu_custom_call.1} parent=35 // pred_check
          %p204 = pneg %p57
        $region42: #{tpu_custom_call.1} parent=35 // pred_check_branch
          %206 = sbr.rel (%p204) target = $region44
        $region43: #{tpu_custom_call.1} parent=35 // pred_region
          %207 = dma.done [#allocation13], 96
        $region44: #{tpu_custom_call.1} parent=35 // pred_fallthru
          _
        // Predicated region
        $region45: #{tpu_custom_call.1} parent=35 // pred_check
          %p208 = pneg %p78
        $region46: #{tpu_custom_call.1} parent=35 // pred_check_branch
          %210 = sbr.rel (%p208) target = $region48
        $region47: #{tpu_custom_call.1} parent=35 // pred_region
          %211 = dma.done [#allocation13], 256
        $region48: #{tpu_custom_call.1} parent=35 // pred_fallthru
          _
        %p212 = pneg %p36
        %p213 = pneg %p33
        %p214 = pneg %p57
        %p215 = pneg %p54
        %p216 = pneg %p78
        %p217 = pneg %p75
        %p218 = scmp.lt.s32.totalorder %s20, 3
        %s219 = scalar_select %p218, %s20, 3
        %s220 = smul.addr %s219, 2
        %s221 = scalar_lea.vmem %s3, %s220
        %p222 = pneg %p104
        %p223 = pneg %p101
        %p224 = pneg %p130
        %p225 = pneg %p127
        %s226 = sand.u32 %s117, 1
        %s227 = scalar_lea.sflag [#allocation11], %s226
        %s228 = sand.u32 %s117, 1
        %s229 = smul.addr %s228, 4
        %s230 = scalar_lea.vmem [#allocation15], %s229
        %p231 = scmp.lt.s32.totalorder %s20, 3
        %s232 = scalar_select %p231, %s20, 3
        %s233 = smul.addr %s232, 2
        %s234 = scalar_lea.vmem %s3, %s233
        %p235 = scmp.eq.s32.totalorder %s20, 0
        // Predicated region
        $region49: #{tpu_custom_call.1} parent=35 // pred_check
          %p236 = pneg %p235
        $region50: #{tpu_custom_call.1} parent=35 // pred_check_branch
          %238 = sbr.rel (%p236) target = $region52
        $region51: #{tpu_custom_call.1} parent=35 // pred_region
          %v239 = vld [vmem:[#allocation12 + $0x2] sm:$0x3]
          %vm240 = vcmask 123904
          %241 = vst.msk [vmem:[#allocation2] sm:$0x3] %vm240, %v239
          %v242 = vld [vmem:[#allocation12 + $0x2] sm:$0x3]
          %v245 = vunpack.c.l.s4 1983009808
          %v246 = vunpack.c.0.s8 %v245
          %v247 = vlaneseq
          %v248 = vshrl.u32 %v247, 7
          %v249 = vsub.s32 %v246, %v248
          %v250 = vrot.slane %v242, %v249
          %251 = vrot.lane.b32.xlu0 %v250, 112
          %v252 = vpop.permute.xlu0 %251
          %vm254 = vcmask 320512
          %255 = vst.msk [vmem:[#allocation3] sm:$0x3] %vm254, %v252
          %v256 = vld [vmem:[#allocation12 + $0x2] sm:$0x3]
          %v259 = vunpack.c.l.s4 1983009808
          %v260 = vunpack.c.0.s8 %v259
          %v261 = vlaneseq
          %v262 = vshrl.u32 %v261, 7
          %v263 = vsub.s32 %v260, %v262
          %v264 = vrot.slane %v256, %v263
          %265 = vrot.lane.b32.xlu0 %v264, 64
          %v266 = vpop.permute.xlu0 %265
          %vm268 = vcmask 254976
          %269 = vst.msk [vmem:[#allocation4] sm:$0x3] %vm268, %v266
          %v270 = vld [vmem:[#allocation12 + $0x2] sm:$0x3]
          %v273 = vunpack.c.l.s4 1983009808
          %v274 = vunpack.c.0.s8 %v273
          %v275 = vlaneseq
          %v276 = vshrl.u32 %v275, 7
          %v277 = vsub.s32 %v274, %v276
          %v278 = vrot.slane %v270, %v277
          %279 = vrot.lane.b32.xlu0 %v278, 32
          %v280 = vpop.permute.xlu0 %279
          %282 = vst.msk [vmem:[#allocation5] sm:$0x3] %vm268, %v280
          %v283 = vld [vmem:[#allocation12 + $0x4] sm:$0x3]
          %284 = vst.msk [vmem:[#allocation6] sm:$0x3] %vm268, %v283
          %v285 = vld [vmem:[#allocation12 + $0x4] sm:$0x3]
          %v288 = vunpack.c.l.s4 1983009808
          %v289 = vunpack.c.0.s8 %v288
          %v290 = vlaneseq
          %v291 = vshrl.u32 %v290, 7
          %v292 = vsub.s32 %v289, %v291
          %v293 = vrot.slane %v285, %v292
          %294 = vrot.lane.b32.xlu0 %v293, 96
          %v295 = vpop.permute.xlu0 %294
          %297 = vst.msk [vmem:[#allocation7] sm:$0x3] %vm268, %v295
          %vm298 = vcmask 58368
          %299 = vst.msk [vmem:[#allocation8] sm:$0x3] %vm298, 0.0
        $region52: #{tpu_custom_call.1} parent=35 // pred_fallthru
          _
        %v300 = vld [vmem:[%s234] sm:$0x3]
        %v301 = vld [vmem:[#allocation12] sm:$0x3]
        %v302 = vld [vmem:[#allocation12 + $0x2] sm:$0x3]
        %v303 = vld [vmem:[#allocation2] sm:$0x3]
        %v304 = vld [vmem:[#allocation3] sm:$0x3]
        %v305 = vld [vmem:[#allocation4] sm:$0x3]
        %v306 = vld [vmem:[#allocation5] sm:$0x3]
        %v307 = vld [vmem:[#allocation6] sm:$0x3]
        %v308 = vld [vmem:[#allocation7] sm:$0x3]
        %v309 = vld [vmem:[#allocation8] sm:$0x3]
        %v310 = vld [vmem:[#allocation9 + $0x20] sm:$0xff]
        %v311 = vld [vmem:[#allocation9 + $0x50] sm:$0xff]
        %v312 = vld [vmem:[#allocation9 + $0x320] ss:$0 sm:$0xff]
        %315 = vrot.lane.b32.xlu0 %v310, 64
        %v316 = vpop.permute.xlu0 %315
        %317 = vrot.lane.b32.xlu0 %v311, 64
        %v318 = vpop.permute.xlu0 %317
        %322 = vrot.lane.b32.xlu0 %v312, 64
        %v323 = vpop.permute.xlu0 %322
        %vm325 = vcmask 130048
        %v327 = vsel %vm325, %v300, 0
        %329 = vmatprep.subr.mxu0 0.0
        %330 = vmatpush1.msra.mxu0 %v316
        %331 = vmatprep.subr.mxu0 0.0
        %332 = vmatpush1.msra.mxu0 %v318
        %333 = vmatprep.subr.mxu0 0.0
        %334 = vmatpush1.msra.mxu0 0.0
        %335 = vmatprep.subr.mxu0 0.0
        %336 = vmatpush1.msra.mxu0 0.0
        %337 = vmatprep.subr.mxu0 0.0
        %338 = vmatpush1.msra.mxu0 0.0
        %339 = vmatprep.subr.mxu0 0.0
        %340 = vmatpush1.msra.mxu0 0.0
        %341 = vmatprep.subr.mxu0 0.0
        %342 = vmatpush1.msra.mxu0 0.0
        %343 = vmatprep.subr.mxu0 0.0
        %344 = vmatpush1.msra.mxu0 0.0
        %345 = vmatprep.subr.mxu0 0.0
        %346 = vmatpush1.msra.mxu0 0.0
        %347 = vmatprep.subr.mxu0 0.0
        %348 = vmatpush1.msra.mxu0 0.0
        %349 = vmatprep.subr.mxu0 0.0
        %350 = vmatpush1.msra.mxu0 0.0
        %351 = vmatprep.subr.mxu0 0.0
        %352 = vmatpush1.msra.mxu0 0.0
        %353 = vmatprep.subr.mxu0 0.0
        %354 = vmatpush1.msra.mxu0 0.0
        %355 = vmatprep.subr.mxu0 0.0
        %356 = vmatpush1.msra.mxu0 0.0
        %357 = vmatprep.subr.mxu0 0.0
        %358 = vmatpush1.msra.mxu0 0.0
        %359 = vmatprep.subr.mxu0 0.0
        %360 = vmatpush1.msra.mxu0 0.0
        %361 = vmatprep.subr.mxu0 0.0
        %362 = vmatpush1.msra.mxu0 0.0
        %363 = vmatprep.subr.mxu0 0.0
        %364 = vmatpush1.msra.mxu0 0.0
        %365 = vmatprep.subr.mxu0 0.0
        %366 = vmatpush1.msra.mxu0 0.0
        %367 = vmatprep.subr.mxu0 0.0
        %368 = vmatpush1.msra.mxu0 0.0
        %369 = vmatprep.subr.mxu0 0.0
        %370 = vmatpush1.msra.mxu0 0.0
        %371 = vmatprep.subr.mxu0 0.0
        %372 = vmatpush1.msra.mxu0 0.0
        %373 = vmatprep.subr.mxu0 0.0
        %374 = vmatpush1.msra.mxu0 0.0
        %375 = vmatprep.subr.mxu0 0.0
        %376 = vmatpush1.msra.mxu0 0.0
        %377 = vmatprep.subr.mxu0 0.0
        %378 = vmatpush1.msra.mxu0 0.0
        %379 = vmatprep.subr.mxu0 0.0
        %380 = vmatpush1.msra.mxu0 0.0
        %381 = vmatprep.subr.mxu0 0.0
        %382 = vmatpush1.msra.mxu0 0.0
        %383 = vmatprep.subr.mxu0 0.0
        %384 = vmatpush1.msra.mxu0 0.0
        %385 = vmatprep.subr.mxu0 0.0
        %386 = vmatpush1.msra.mxu0 0.0
        %387 = vmatprep.subr.mxu0 0.0
        %388 = vmatpush1.msra.mxu0 0.0
        %389 = vmatprep.subr.mxu0 0.0
        %390 = vmatpush1.msra.mxu0 0.0
        %391 = vmatprep.subr.mxu0 0.0
        %392 = vmatpush1.msra.mxu0 0.0
        %393 = vmatprep.mubr.f32.mxu0 0.0
        %394 = vmatmul.mubr.f32.gmra.mrb[0].mxu0 %v327
        %v395 = vpop.f32.mrb[0].mxu0
        %v396 = vadd.f32 %v323, %v395
        %v397 = vpop.f32.mrb[0].mxu0
        %398 = vdwg.mxu0
        %v399 = vmax.f32 %v396, 0.0
        %400 = vrot.lane.b32.xlu0 %v300, 112
        %v401 = vpop.permute.xlu0 %400
        %v403 = vmul.f32 %v399, %v401
        %v404 = vld [vmem:[#allocation9 + $0x20] sm:$0xff]
        %v405 = vld [vmem:[#allocation9 + $0x50] sm:$0xff]
        %v406 = vld [vmem:[#allocation9 + $0x80] sm:$0xff]
        %v407 = vld [vmem:[#allocation9 + $0xb0] sm:$0xff]
        %412 = vrot.lane.b32.xlu0 %v404, 32
        %v413 = vpop.permute.xlu0 %412
        %414 = vrot.lane.b32.xlu0 %v405, 32
        %v415 = vpop.permute.xlu0 %414
        %416 = vrot.lane.b32.xlu0 %v406, 32
        %v417 = vpop.permute.xlu0 %416
        %418 = vrot.lane.b32.xlu0 %v407, 32
        %v419 = vpop.permute.xlu0 %418
        %424 = vrot.lane.b32.xlu0 %v312, 32
        %v425 = vpop.permute.xlu0 %424
        %vm427 = vcmask 261120
        %v429 = vsel %vm427, %v403, 0
        %431 = vmatprep.subr.mxu0 0.0
        %432 = vmatpush1.msra.mxu0 %v413
        %433 = vmatprep.subr.mxu0 0.0
        %434 = vmatpush1.msra.mxu0 %v415
        %435 = vmatprep.subr.mxu0 0.0
        %436 = vmatpush1.msra.mxu0 %v417
        %437 = vmatprep.subr.mxu0 0.0
        %438 = vmatpush1.msra.mxu0 %v419
        %439 = vmatprep.subr.mxu0 0.0
        %440 = vmatpush1.msra.mxu0 0.0
        %441 = vmatprep.subr.mxu0 0.0
        %442 = vmatpush1.msra.mxu0 0.0
        %443 = vmatprep.subr.mxu0 0.0
        %444 = vmatpush1.msra.mxu0 0.0
        %445 = vmatprep.subr.mxu0 0.0
        %446 = vmatpush1.msra.mxu0 0.0
        %447 = vmatprep.subr.mxu0 0.0
        %448 = vmatpush1.msra.mxu0 0.0
        %449 = vmatprep.subr.mxu0 0.0
        %450 = vmatpush1.msra.mxu0 0.0
        %451 = vmatprep.subr.mxu0 0.0
        %452 = vmatpush1.msra.mxu0 0.0
        %453 = vmatprep.subr.mxu0 0.0
        %454 = vmatpush1.msra.mxu0 0.0
        %455 = vmatprep.subr.mxu0 0.0
        %456 = vmatpush1.msra.mxu0 0.0
        %457 = vmatprep.subr.mxu0 0.0
        %458 = vmatpush1.msra.mxu0 0.0
        %459 = vmatprep.subr.mxu0 0.0
        %460 = vmatpush1.msra.mxu0 0.0
        %461 = vmatprep.subr.mxu0 0.0
        %462 = vmatpush1.msra.mxu0 0.0
        %463 = vmatprep.subr.mxu0 0.0
        %464 = vmatpush1.msra.mxu0 0.0
        %465 = vmatprep.subr.mxu0 0.0
        %466 = vmatpush1.msra.mxu0 0.0
        %467 = vmatprep.subr.mxu0 0.0
        %468 = vmatpush1.msra.mxu0 0.0
        %469 = vmatprep.subr.mxu0 0.0
        %470 = vmatpush1.msra.mxu0 0.0
        %471 = vmatprep.subr.mxu0 0.0
        %472 = vmatpush1.msra.mxu0 0.0
        %473 = vmatprep.subr.mxu0 0.0
        %474 = vmatpush1.msra.mxu0 0.0
        %475 = vmatprep.subr.mxu0 0.0
        %476 = vmatpush1.msra.mxu0 0.0
        %477 = vmatprep.subr.mxu0 0.0
        %478 = vmatpush1.msra.mxu0 0.0
        %479 = vmatprep.subr.mxu0 0.0
        %480 = vmatpush1.msra.mxu0 0.0
        %481 = vmatprep.subr.mxu0 0.0
        %482 = vmatpush1.msra.mxu0 0.0
        %483 = vmatprep.subr.mxu0 0.0
        %484 = vmatpush1.msra.mxu0 0.0
        %485 = vmatprep.subr.mxu0 0.0
        %486 = vmatpush1.msra.mxu0 0.0
        %487 = vmatprep.subr.mxu0 0.0
        %488 = vmatpush1.msra.mxu0 0.0
        %489 = vmatprep.subr.mxu0 0.0
        %490 = vmatpush1.msra.mxu0 0.0
        %491 = vmatprep.subr.mxu0 0.0
        %492 = vmatpush1.msra.mxu0 0.0
        %493 = vmatprep.subr.mxu0 0.0
        %494 = vmatpush1.msra.mxu0 0.0
        %495 = vmatprep.mubr.f32.mxu0 0.0
        %496 = vmatmul.mubr.f32.gmra.mrb[0].mxu0 %v429
        %v497 = vpop.f32.mrb[0].mxu0
        %v498 = vadd.f32 %v425, %v497
        %v499 = vpop.f32.mrb[0].mxu0
        %500 = vdwg.mxu0
        %v501 = vmax.f32 %v498, 0.0
        %502 = vrot.lane.b32.xlu0 %v300, 80
        %v503 = vpop.permute.xlu0 %502
        %v505 = vmul.f32 %v501, %v503
        %v506 = vld [vmem:[#allocation9 + $0x20] sm:$0xff]
        %v507 = vld [vmem:[#allocation9 + $0x50] sm:$0xff]
        %v508 = vld [vmem:[#allocation9 + $0x80] sm:$0xff]
        %v509 = vld [vmem:[#allocation9 + $0xb0] sm:$0xff]
        %v510 = vld [vmem:[#allocation9 + $0xe0] sm:$0xff]
        %v511 = vld [vmem:[#allocation9 + $0x110] sm:$0xff]
        %v512 = vld [vmem:[#allocation9 + $0x140] sm:$0xff]
        %v513 = vld [vmem:[#allocation9 + $0x170] sm:$0xff]
        %v514 = vld [vmem:[#allocation9 + $0x1a0] sm:$0xff]
        %v516 = vsel %vm427, %v505, 0
        %518 = vmatprep.subr.mxu0 0.0
        %519 = vmatpush1.msra.mxu0 %v511
        %520 = vmatprep.subr.mxu0 0.0
        %521 = vmatpush1.msra.mxu0 %v512
        %522 = vmatprep.subr.mxu0 0.0
        %523 = vmatpush1.msra.mxu0 %v513
        %524 = vmatprep.subr.mxu0 0.0
        %525 = vmatpush1.msra.mxu0 %v514
        %526 = vmatprep.subr.mxu0 0.0
        %527 = vmatpush1.msra.mxu0 0.0
        %528 = vmatprep.subr.mxu0 0.0
        %529 = vmatpush1.msra.mxu0 0.0
        %530 = vmatprep.subr.mxu0 0.0
        %531 = vmatpush1.msra.mxu0 0.0
        %532 = vmatprep.subr.mxu0 0.0
        %533 = vmatpush1.msra.mxu0 0.0
        %534 = vmatprep.subr.mxu0 0.0
        %535 = vmatpush1.msra.mxu0 0.0
        %536 = vmatprep.subr.mxu0 0.0
        %537 = vmatpush1.msra.mxu0 0.0
        %538 = vmatprep.subr.mxu0 0.0
        %539 = vmatpush1.msra.mxu0 0.0
        %540 = vmatprep.subr.mxu0 0.0
        %541 = vmatpush1.msra.mxu0 0.0
        %542 = vmatprep.subr.mxu0 0.0
        %543 = vmatpush1.msra.mxu0 0.0
        %544 = vmatprep.subr.mxu0 0.0
        %545 = vmatpush1.msra.mxu0 0.0
        %546 = vmatprep.subr.mxu0 0.0
        %547 = vmatpush1.msra.mxu0 0.0
        %548 = vmatprep.subr.mxu0 0.0
        %549 = vmatpush1.msra.mxu0 0.0
        %550 = vmatprep.subr.mxu0 0.0
        %551 = vmatpush1.msra.mxu0 0.0
        %552 = vmatprep.subr.mxu0 0.0
        %553 = vmatpush1.msra.mxu0 0.0
        %554 = vmatprep.subr.mxu0 0.0
        %555 = vmatpush1.msra.mxu0 0.0
        %556 = vmatprep.subr.mxu0 0.0
        %557 = vmatpush1.msra.mxu0 0.0
        %558 = vmatprep.subr.mxu0 0.0
        %559 = vmatpush1.msra.mxu0 0.0
        %560 = vmatprep.subr.mxu0 0.0
        %561 = vmatpush1.msra.mxu0 0.0
        %562 = vmatprep.subr.mxu0 0.0
        %563 = vmatpush1.msra.mxu0 0.0
        %564 = vmatprep.subr.mxu0 0.0
        %565 = vmatpush1.msra.mxu0 0.0
        %566 = vmatprep.subr.mxu0 0.0
        %567 = vmatpush1.msra.mxu0 0.0
        %568 = vmatprep.subr.mxu0 0.0
        %569 = vmatpush1.msra.mxu0 0.0
        %570 = vmatprep.subr.mxu0 0.0
        %571 = vmatpush1.msra.mxu0 0.0
        %572 = vmatprep.subr.mxu0 0.0
        %573 = vmatpush1.msra.mxu0 0.0
        %574 = vmatprep.subr.mxu0 0.0
        %575 = vmatpush1.msra.mxu0 0.0
        %576 = vmatprep.subr.mxu0 0.0
        %577 = vmatpush1.msra.mxu0 0.0
        %578 = vmatprep.subr.mxu0 0.0
        %579 = vmatpush1.msra.mxu0 0.0
        %580 = vmatprep.subr.mxu0 0.0
        %581 = vmatpush1.msra.mxu0 0.0
        %582 = vmatprep.mubr.f32.mxu0 0.0
        %583 = vmatmul.mubr.f32.gmra.mrb[0].mxu0 %v516
        %v584 = vpop.f32.mrb[0].mxu0
        %v585 = vadd.f32 0.0, %v584
        %v586 = vpop.f32.mrb[0].mxu0
        %587 = vdwg.mxu0
        %vm588 = vcmask 326656
        %v590 = vsel %vm588, %v304, 0
        %592 = vmatprep.subr.mxu0 0.0
        %593 = vmatpush1.msra.mxu0 %v506
        %594 = vmatprep.subr.mxu0 0.0
        %595 = vmatpush1.msra.mxu0 %v507
        %596 = vmatprep.subr.mxu0 0.0
        %597 = vmatpush1.msra.mxu0 %v508
        %598 = vmatprep.subr.mxu0 0.0
        %599 = vmatpush1.msra.mxu0 %v509
        %600 = vmatprep.subr.mxu0 0.0
        %601 = vmatpush1.msra.mxu0 %v510
        %602 = vmatprep.subr.mxu0 0.0
        %603 = vmatpush1.msra.mxu0 0.0
        %604 = vmatprep.subr.mxu0 0.0
        %605 = vmatpush1.msra.mxu0 0.0
        %606 = vmatprep.subr.mxu0 0.0
        %607 = vmatpush1.msra.mxu0 0.0
        %608 = vmatprep.subr.mxu0 0.0
        %609 = vmatpush1.msra.mxu0 0.0
        %610 = vmatprep.subr.mxu0 0.0
        %611 = vmatpush1.msra.mxu0 0.0
        %612 = vmatprep.subr.mxu0 0.0
        %613 = vmatpush1.msra.mxu0 0.0
        %614 = vmatprep.subr.mxu0 0.0
        %615 = vmatpush1.msra.mxu0 0.0
        %616 = vmatprep.subr.mxu0 0.0
        %617 = vmatpush1.msra.mxu0 0.0
        %618 = vmatprep.subr.mxu0 0.0
        %619 = vmatpush1.msra.mxu0 0.0
        %620 = vmatprep.subr.mxu0 0.0
        %621 = vmatpush1.msra.mxu0 0.0
        %622 = vmatprep.subr.mxu0 0.0
        %623 = vmatpush1.msra.mxu0 0.0
        %624 = vmatprep.subr.mxu0 0.0
        %625 = vmatpush1.msra.mxu0 0.0
        %626 = vmatprep.subr.mxu0 0.0
        %627 = vmatpush1.msra.mxu0 0.0
        %628 = vmatprep.subr.mxu0 0.0
        %629 = vmatpush1.msra.mxu0 0.0
        %630 = vmatprep.subr.mxu0 0.0
        %631 = vmatpush1.msra.mxu0 0.0
        %632 = vmatprep.subr.mxu0 0.0
        %633 = vmatpush1.msra.mxu0 0.0
        %634 = vmatprep.subr.mxu0 0.0
        %635 = vmatpush1.msra.mxu0 0.0
        %636 = vmatprep.subr.mxu0 0.0
        %637 = vmatpush1.msra.mxu0 0.0
        %638 = vmatprep.subr.mxu0 0.0
        %639 = vmatpush1.msra.mxu0 0.0
        %640 = vmatprep.subr.mxu0 0.0
        %641 = vmatpush1.msra.mxu0 0.0
        %642 = vmatprep.subr.mxu0 0.0
        %643 = vmatpush1.msra.mxu0 0.0
        %644 = vmatprep.subr.mxu0 0.0
        %645 = vmatpush1.msra.mxu0 0.0
        %646 = vmatprep.subr.mxu0 0.0
        %647 = vmatpush1.msra.mxu0 0.0
        %648 = vmatprep.subr.mxu0 0.0
        %649 = vmatpush1.msra.mxu0 0.0
        %650 = vmatprep.subr.mxu0 0.0
        %651 = vmatpush1.msra.mxu0 0.0
        %652 = vmatprep.subr.mxu0 0.0
        %653 = vmatpush1.msra.mxu0 0.0
        %654 = vmatprep.subr.mxu0 0.0
        %655 = vmatpush1.msra.mxu0 0.0
        %656 = vmatprep.mubr.f32.mxu0 0.0
        %657 = vmatmul.mubr.f32.gmra.mrb[0].mxu0 %v590
        %v658 = vpop.f32.mrb[0].mxu0
        %v659 = vadd.f32 %v585, %v658
        %v660 = vpop.f32.mrb[0].mxu0
        %661 = vdwg.mxu0
        %v662 = vld [vmem:[#allocation9 + $0x1d0] sm:$0xff]
        %v663 = vld [vmem:[#allocation9 + $0x200] sm:$0xff]
        %v665 = vsel %vm325, %v303, 0
        %667 = vmatprep.subr.mxu0 0.0
        %668 = vmatpush1.msra.mxu0 %v662
        %669 = vmatprep.subr.mxu0 0.0
        %670 = vmatpush1.msra.mxu0 %v663
        %671 = vmatprep.subr.mxu0 0.0
        %672 = vmatpush1.msra.mxu0 0.0
        %673 = vmatprep.subr.mxu0 0.0
        %674 = vmatpush1.msra.mxu0 0.0
        %675 = vmatprep.subr.mxu0 0.0
        %676 = vmatpush1.msra.mxu0 0.0
        %677 = vmatprep.subr.mxu0 0.0
        %678 = vmatpush1.msra.mxu0 0.0
        %679 = vmatprep.subr.mxu0 0.0
        %680 = vmatpush1.msra.mxu0 0.0
        %681 = vmatprep.subr.mxu0 0.0
        %682 = vmatpush1.msra.mxu0 0.0
        %683 = vmatprep.subr.mxu0 0.0
        %684 = vmatpush1.msra.mxu0 0.0
        %685 = vmatprep.subr.mxu0 0.0
        %686 = vmatpush1.msra.mxu0 0.0
        %687 = vmatprep.subr.mxu0 0.0
        %688 = vmatpush1.msra.mxu0 0.0
        %689 = vmatprep.subr.mxu0 0.0
        %690 = vmatpush1.msra.mxu0 0.0
        %691 = vmatprep.subr.mxu0 0.0
        %692 = vmatpush1.msra.mxu0 0.0
        %693 = vmatprep.subr.mxu0 0.0
        %694 = vmatpush1.msra.mxu0 0.0
        %695 = vmatprep.subr.mxu0 0.0
        %696 = vmatpush1.msra.mxu0 0.0
        %697 = vmatprep.subr.mxu0 0.0
        %698 = vmatpush1.msra.mxu0 0.0
        %699 = vmatprep.subr.mxu0 0.0
        %700 = vmatpush1.msra.mxu0 0.0
        %701 = vmatprep.subr.mxu0 0.0
        %702 = vmatpush1.msra.mxu0 0.0
        %703 = vmatprep.subr.mxu0 0.0
        %704 = vmatpush1.msra.mxu0 0.0
        %705 = vmatprep.subr.mxu0 0.0
        %706 = vmatpush1.msra.mxu0 0.0
        %707 = vmatprep.subr.mxu0 0.0
        %708 = vmatpush1.msra.mxu0 0.0
        %709 = vmatprep.subr.mxu0 0.0
        %710 = vmatpush1.msra.mxu0 0.0
        %711 = vmatprep.subr.mxu0 0.0
        %712 = vmatpush1.msra.mxu0 0.0
        %713 = vmatprep.subr.mxu0 0.0
        %714 = vmatpush1.msra.mxu0 0.0
        %715 = vmatprep.subr.mxu0 0.0
        %716 = vmatpush1.msra.mxu0 0.0
        %717 = vmatprep.subr.mxu0 0.0
        %718 = vmatpush1.msra.mxu0 0.0
        %719 = vmatprep.subr.mxu0 0.0
        %720 = vmatpush1.msra.mxu0 0.0
        %721 = vmatprep.subr.mxu0 0.0
        %722 = vmatpush1.msra.mxu0 0.0
        %723 = vmatprep.subr.mxu0 0.0
        %724 = vmatpush1.msra.mxu0 0.0
        %725 = vmatprep.subr.mxu0 0.0
        %726 = vmatpush1.msra.mxu0 0.0
        %727 = vmatprep.subr.mxu0 0.0
        %728 = vmatpush1.msra.mxu0 0.0
        %729 = vmatprep.subr.mxu0 0.0
        %730 = vmatpush1.msra.mxu0 0.0
        %731 = vmatprep.mubr.f32.mxu0 0.0
        %732 = vmatmul.mubr.f32.gmra.mrb[0].mxu0 %v665
        %v733 = vpop.f32.mrb[0].mxu0
        %v734 = vadd.f32 0.0, %v733
        %v735 = vpop.f32.mrb[0].mxu0
        %736 = vdwg.mxu0
        %v737 = vadd.f32 %v659, %v734
        %v738 = vadd.f32 %v737, %v312
        %v739 = vmul.f32 %v738, 0.5
        %v740 = vtanh.pop %v739
        %v741 = vadd.f32 %v740, 1.0
        %v742 = vmul.f32 %v741, 0.5
        %744 = vrot.lane.b32.xlu0 %v738, 80
        %v745 = vpop.permute.xlu0 %744
        %v747 = vmul.f32 %v742, %v745
        %749 = vrot.lane.b32.xlu0 %v747, 32
        %v750 = vpop.permute.xlu0 %749
        %v752 = vadd.f32 %v738, %v750
        %v753 = vtanh.pop %v752
        %v754 = vsub.f32 1.0, %v742
        %756 = vrot.lane.b32.xlu0 %v753, 112
        %v757 = vpop.permute.xlu0 %756
        %v759 = vmul.f32 %v754, %v757
        %760 = vrot.lane.b32.xlu0 %v303, 16
        %v761 = vpop.permute.xlu0 %760
        %v763 = vmul.f32 %v742, %v761
        %v764 = vadd.f32 %v759, %v763
        %v765 = vld [vmem:[#allocation9] sm:$0xff]
        %v766 = vld [vmem:[#allocation9 + $0x30] sm:$0xff]
        %v767 = vld [vmem:[#allocation9 + $0x300] ss:$0 sm:$0xff]
        %769 = vrot.lane.b32.xlu0 %v764, 112
        %v770 = vpop.permute.xlu0 %769
        %v771 = vsel %vm325, %v770, 0
        %773 = vmatprep.subr.mxu0 0.0
        %774 = vmatpush1.msra.mxu0 %v765
        %775 = vmatprep.subr.mxu0 0.0
        %776 = vmatpush1.msra.mxu0 %v766
        %777 = vmatprep.subr.mxu0 0.0
        %778 = vmatpush1.msra.mxu0 0.0
        %779 = vmatprep.subr.mxu0 0.0
        %780 = vmatpush1.msra.mxu0 0.0
        %781 = vmatprep.subr.mxu0 0.0
        %782 = vmatpush1.msra.mxu0 0.0
        %783 = vmatprep.subr.mxu0 0.0
        %784 = vmatpush1.msra.mxu0 0.0
        %785 = vmatprep.subr.mxu0 0.0
        %786 = vmatpush1.msra.mxu0 0.0
        %787 = vmatprep.subr.mxu0 0.0
        %788 = vmatpush1.msra.mxu0 0.0
        %789 = vmatprep.subr.mxu0 0.0
        %790 = vmatpush1.msra.mxu0 0.0
        %791 = vmatprep.subr.mxu0 0.0
        %792 = vmatpush1.msra.mxu0 0.0
        %793 = vmatprep.subr.mxu0 0.0
        %794 = vmatpush1.msra.mxu0 0.0
        %795 = vmatprep.subr.mxu0 0.0
        %796 = vmatpush1.msra.mxu0 0.0
        %797 = vmatprep.subr.mxu0 0.0
        %798 = vmatpush1.msra.mxu0 0.0
        %799 = vmatprep.subr.mxu0 0.0
        %800 = vmatpush1.msra.mxu0 0.0
        %801 = vmatprep.subr.mxu0 0.0
        %802 = vmatpush1.msra.mxu0 0.0
        %803 = vmatprep.subr.mxu0 0.0
        %804 = vmatpush1.msra.mxu0 0.0
        %805 = vmatprep.subr.mxu0 0.0
        %806 = vmatpush1.msra.mxu0 0.0
        %807 = vmatprep.subr.mxu0 0.0
        %808 = vmatpush1.msra.mxu0 0.0
        %809 = vmatprep.subr.mxu0 0.0
        %810 = vmatpush1.msra.mxu0 0.0
        %811 = vmatprep.subr.mxu0 0.0
        %812 = vmatpush1.msra.mxu0 0.0
        %813 = vmatprep.subr.mxu0 0.0
        %814 = vmatpush1.msra.mxu0 0.0
        %815 = vmatprep.subr.mxu0 0.0
        %816 = vmatpush1.msra.mxu0 0.0
        %817 = vmatprep.subr.mxu0 0.0
        %818 = vmatpush1.msra.mxu0 0.0
        %819 = vmatprep.subr.mxu0 0.0
        %820 = vmatpush1.msra.mxu0 0.0
        %821 = vmatprep.subr.mxu0 0.0
        %822 = vmatpush1.msra.mxu0 0.0
        %823 = vmatprep.subr.mxu0 0.0
        %824 = vmatpush1.msra.mxu0 0.0
        %825 = vmatprep.subr.mxu0 0.0
        %826 = vmatpush1.msra.mxu0 0.0
        %827 = vmatprep.subr.mxu0 0.0
        %828 = vmatpush1.msra.mxu0 0.0
        %829 = vmatprep.subr.mxu0 0.0
        %830 = vmatpush1.msra.mxu0 0.0
        %831 = vmatprep.subr.mxu0 0.0
        %832 = vmatpush1.msra.mxu0 0.0
        %833 = vmatprep.subr.mxu0 0.0
        %834 = vmatpush1.msra.mxu0 0.0
        %835 = vmatprep.subr.mxu0 0.0
        %836 = vmatpush1.msra.mxu0 0.0
        %837 = vmatprep.mubr.f32.mxu0 0.0
        %838 = vmatmul.mubr.f32.gmra.mrb[0].mxu0 %v771
        %v839 = vpop.f32.mrb[0].mxu0
        %v840 = vadd.f32 %v767, %v839
        %v841 = vpop.f32.mrb[0].mxu0
        %842 = vdwg.mxu0
        %v843 = vld [vmem:[#allocation9 + $0x8] sm:$0xff]
        %v844 = vld [vmem:[#allocation9 + $0x308] ss:$0 sm:$0xff]
        %vm845 = vcmask 64512
        %v847 = vsel %vm845, %v309, 0
        %849 = vmatprep.subr.mxu0 0.0
        %850 = vmatpush1.msra.mxu0 %v843
        %851 = vmatprep.subr.mxu0 0.0
        %852 = vmatpush1.msra.mxu0 0.0
        %853 = vmatprep.subr.mxu0 0.0
        %854 = vmatpush1.msra.mxu0 0.0
        %855 = vmatprep.subr.mxu0 0.0
        %856 = vmatpush1.msra.mxu0 0.0
        %857 = vmatprep.subr.mxu0 0.0
        %858 = vmatpush1.msra.mxu0 0.0
        %859 = vmatprep.subr.mxu0 0.0
        %860 = vmatpush1.msra.mxu0 0.0
        %861 = vmatprep.subr.mxu0 0.0
        %862 = vmatpush1.msra.mxu0 0.0
        %863 = vmatprep.subr.mxu0 0.0
        %864 = vmatpush1.msra.mxu0 0.0
        %865 = vmatprep.subr.mxu0 0.0
        %866 = vmatpush1.msra.mxu0 0.0
        %867 = vmatprep.subr.mxu0 0.0
        %868 = vmatpush1.msra.mxu0 0.0
        %869 = vmatprep.subr.mxu0 0.0
        %870 = vmatpush1.msra.mxu0 0.0
        %871 = vmatprep.subr.mxu0 0.0
        %872 = vmatpush1.msra.mxu0 0.0
        %873 = vmatprep.subr.mxu0 0.0
        %874 = vmatpush1.msra.mxu0 0.0
        %875 = vmatprep.subr.mxu0 0.0
        %876 = vmatpush1.msra.mxu0 0.0
        %877 = vmatprep.subr.mxu0 0.0
        %878 = vmatpush1.msra.mxu0 0.0
        %879 = vmatprep.subr.mxu0 0.0
        %880 = vmatpush1.msra.mxu0 0.0
        %881 = vmatprep.subr.mxu0 0.0
        %882 = vmatpush1.msra.mxu0 0.0
        %883 = vmatprep.subr.mxu0 0.0
        %884 = vmatpush1.msra.mxu0 0.0
        %885 = vmatprep.subr.mxu0 0.0
        %886 = vmatpush1.msra.mxu0 0.0
        %887 = vmatprep.subr.mxu0 0.0
        %888 = vmatpush1.msra.mxu0 0.0
        %889 = vmatprep.subr.mxu0 0.0
        %890 = vmatpush1.msra.mxu0 0.0
        %891 = vmatprep.subr.mxu0 0.0
        %892 = vmatpush1.msra.mxu0 0.0
        %893 = vmatprep.subr.mxu0 0.0
        %894 = vmatpush1.msra.mxu0 0.0
        %895 = vmatprep.subr.mxu0 0.0
        %896 = vmatpush1.msra.mxu0 0.0
        %897 = vmatprep.subr.mxu0 0.0
        %898 = vmatpush1.msra.mxu0 0.0
        %899 = vmatprep.subr.mxu0 0.0
        %900 = vmatpush1.msra.mxu0 0.0
        %901 = vmatprep.subr.mxu0 0.0
        %902 = vmatpush1.msra.mxu0 0.0
        %903 = vmatprep.subr.mxu0 0.0
        %904 = vmatpush1.msra.mxu0 0.0
        %905 = vmatprep.subr.mxu0 0.0
        %906 = vmatpush1.msra.mxu0 0.0
        %907 = vmatprep.subr.mxu0 0.0
        %908 = vmatpush1.msra.mxu0 0.0
        %909 = vmatprep.subr.mxu0 0.0
        %910 = vmatpush1.msra.mxu0 0.0
        %911 = vmatprep.subr.mxu0 0.0
        %912 = vmatpush1.msra.mxu0 0.0
        %913 = vmatprep.mubr.f32.mxu0 0.0
        %914 = vmatmul.mubr.f32.gmra.mrb[0].mxu0 %v847
        %v915 = vpop.f32.mrb[0].mxu0
        %v916 = vadd.f32 %v844, %v915
        %v917 = vpop.f32.mrb[0].mxu0
        %918 = vdwg.mxu0
        %v919 = vadd.f32 %v840, %v301
        %v920 = vadd.f32 %v919, %v916
        %v921 = vtanh.pop %v920
        %v922 = vld [vmem:[#allocation9 + $0x28] sm:$0xff]
        %v923 = vld [vmem:[#allocation9 + $0x58] sm:$0xff]
        %v924 = vld [vmem:[#allocation9 + $0x88] sm:$0xff]
        %v925 = vld [vmem:[#allocation9 + $0xb8] sm:$0xff]
        %v926 = vld [vmem:[#allocation9 + $0xe8] sm:$0xff]
        %v927 = vld [vmem:[#allocation9 + $0x118] sm:$0xff]
        %v928 = vld [vmem:[#allocation9 + $0x148] sm:$0xff]
        %v929 = vld [vmem:[#allocation9 + $0x178] sm:$0xff]
        %v930 = vld [vmem:[#allocation9 + $0x1a8] sm:$0xff]
        %v931 = vld [vmem:[#allocation9 + $0x1d8] sm:$0xff]
        %v932 = vld [vmem:[#allocation9 + $0x208] sm:$0xff]
        %v933 = vld [vmem:[#allocation9 + $0x238] sm:$0xff]
        %v934 = vld [vmem:[#allocation9 + $0x268] sm:$0xff]
        %v935 = vld [vmem:[#allocation9 + $0x298] sm:$0xff]
        %v936 = vld [vmem:[#allocation9 + $0x2c8] sm:$0xff]
        %v937 = vld [vmem:[#allocation9 + $0x2f8] sm:$0xff]
        %954 = vrot.lane.b32.xlu0 %v922, 64
        %v955 = vpop.permute.xlu0 %954
        %956 = vrot.lane.b32.xlu0 %v923, 64
        %v957 = vpop.permute.xlu0 %956
        %958 = vrot.lane.b32.xlu0 %v924, 64
        %v959 = vpop.permute.xlu0 %958
        %960 = vrot.lane.b32.xlu0 %v925, 64
        %v961 = vpop.permute.xlu0 %960
        %962 = vrot.lane.b32.xlu0 %v926, 64
        %v963 = vpop.permute.xlu0 %962
        %964 = vrot.lane.b32.xlu0 %v927, 64
        %v965 = vpop.permute.xlu0 %964
        %966 = vrot.lane.b32.xlu0 %v928, 64
        %v967 = vpop.permute.xlu0 %966
        %968 = vrot.lane.b32.xlu0 %v929, 64
        %v969 = vpop.permute.xlu0 %968
        %970 = vrot.lane.b32.xlu0 %v930, 64
        %v971 = vpop.permute.xlu0 %970
        %972 = vrot.lane.b32.xlu0 %v931, 64
        %v973 = vpop.permute.xlu0 %972
        %974 = vrot.lane.b32.xlu0 %v932, 64
        %v975 = vpop.permute.xlu0 %974
        %976 = vrot.lane.b32.xlu0 %v933, 64
        %v977 = vpop.permute.xlu0 %976
        %978 = vrot.lane.b32.xlu0 %v934, 64
        %v979 = vpop.permute.xlu0 %978
        %980 = vrot.lane.b32.xlu0 %v935, 64
        %v981 = vpop.permute.xlu0 %980
        %982 = vrot.lane.b32.xlu0 %v936, 64
        %v983 = vpop.permute.xlu0 %982
        %984 = vrot.lane.b32.xlu0 %v937, 64
        %v985 = vpop.permute.xlu0 %984
        %1002 = vmatprep.subr.mxu0 0.0
        %1003 = vmatpush1.msra.mxu0 %v955
        %1004 = vmatprep.subr.mxu0 0.0
        %1005 = vmatpush1.msra.mxu0 %v957
        %1006 = vmatprep.subr.mxu0 0.0
        %1007 = vmatpush1.msra.mxu0 %v959
        %1008 = vmatprep.subr.mxu0 0.0
        %1009 = vmatpush1.msra.mxu0 %v961
        %1010 = vmatprep.subr.mxu0 0.0
        %1011 = vmatpush1.msra.mxu0 %v963
        %1012 = vmatprep.subr.mxu0 0.0
        %1013 = vmatpush1.msra.mxu0 %v965
        %1014 = vmatprep.subr.mxu0 0.0
        %1015 = vmatpush1.msra.mxu0 %v967
        %1016 = vmatprep.subr.mxu0 0.0
        %1017 = vmatpush1.msra.mxu0 %v969
        %1018 = vmatprep.subr.mxu0 0.0
        %1019 = vmatpush1.msra.mxu0 %v971
        %1020 = vmatprep.subr.mxu0 0.0
        %1021 = vmatpush1.msra.mxu0 %v973
        %1022 = vmatprep.subr.mxu0 0.0
        %1023 = vmatpush1.msra.mxu0 %v975
        %1024 = vmatprep.subr.mxu0 0.0
        %1025 = vmatpush1.msra.mxu0 %v977
        %1026 = vmatprep.subr.mxu0 0.0
        %1027 = vmatpush1.msra.mxu0 %v979
        %1028 = vmatprep.subr.mxu0 0.0
        %1029 = vmatpush1.msra.mxu0 %v981
        %1030 = vmatprep.subr.mxu0 0.0
        %1031 = vmatpush1.msra.mxu0 %v983
        %1032 = vmatprep.subr.mxu0 0.0
        %1033 = vmatpush1.msra.mxu0 %v985
        %1034 = vmatprep.subr.mxu0 0.0
        %1035 = vmatpush1.msra.mxu0 0.0
        %1036 = vmatprep.subr.mxu0 0.0
        %1037 = vmatpush1.msra.mxu0 0.0
        %1038 = vmatprep.subr.mxu0 0.0
        %1039 = vmatpush1.msra.mxu0 0.0
        %1040 = vmatprep.subr.mxu0 0.0
        %1041 = vmatpush1.msra.mxu0 0.0
        %1042 = vmatprep.subr.mxu0 0.0
        %1043 = vmatpush1.msra.mxu0 0.0
        %1044 = vmatprep.subr.mxu0 0.0
        %1045 = vmatpush1.msra.mxu0 0.0
        %1046 = vmatprep.subr.mxu0 0.0
        %1047 = vmatpush1.msra.mxu0 0.0
        %1048 = vmatprep.subr.mxu0 0.0
        %1049 = vmatpush1.msra.mxu0 0.0
        %1050 = vmatprep.subr.mxu0 0.0
        %1051 = vmatpush1.msra.mxu0 0.0
        %1052 = vmatprep.subr.mxu0 0.0
        %1053 = vmatpush1.msra.mxu0 0.0
        %1054 = vmatprep.subr.mxu0 0.0
        %1055 = vmatpush1.msra.mxu0 0.0
        %1056 = vmatprep.subr.mxu0 0.0
        %1057 = vmatpush1.msra.mxu0 0.0
        %1058 = vmatprep.subr.mxu0 0.0
        %1059 = vmatpush1.msra.mxu0 0.0
        %1060 = vmatprep.subr.mxu0 0.0
        %1061 = vmatpush1.msra.mxu0 0.0
        %1062 = vmatprep.subr.mxu0 0.0
        %1063 = vmatpush1.msra.mxu0 0.0
        %1064 = vmatprep.subr.mxu0 0.0
        %1065 = vmatpush1.msra.mxu0 0.0
        %1066 = vmatprep.mubr.f32.mxu0 0.0
        %1067 = vmatmul.mubr.f32.gmra.mrb[0].mxu0 %v921
        %v1068 = vpop.f32.mrb[0].mxu0
        %v1069 = vadd.f32 0.0, %v1068
        %v1070 = vpop.f32.mrb[0].mxu0
        %1071 = vdwg.mxu0
        %v1074 = vunpack.c.l.s4 1983009808
        %v1075 = vunpack.c.0.s8 %v1074
        %v1076 = vlaneseq
        %v1077 = vshrl.u32 %v1076, 7
        %v1078 = vsub.s32 %v1075, %v1077
        %v1079 = vrot.slane %v302, %v1078
        %1080 = vrot.lane.b32.xlu0 %v1079, 72
        %v1081 = vpop.permute.xlu0 %1080
        %v1083 = vmul.f32 %v1069, %v1081
        %vm1084 = vcmask 58368
        %v1085 = vsel %vm1084, %v1083, -inf
        %1086 = vmax.xlane.f32.xlu0 %v1085
        %v1087 = vpop.xlane.xlu0 %1086
        %v1088 = vsub.f32 %v1083, %v1087
        %v1089 = vmul.f32 %v1088, 1.442695
        %v1090 = vpow.pop %v1089
        %v1091 = vsel %vm1084, %v1090, 0.0
        %1092 = vadd.xlane.f32.xlu0 %v1091
        %v1093 = vpop.xlane.xlu0 %1092
        %v1094 = vrcp.pop %v1093
        %v1095 = vmul.f32 %v1090, %v1094
        %v1096 = vlaneseq
        %v1097 = vshrl.u32 %v1096, 7
        %v1098 = vsub.s32 0, %v1097
        %v1099 = vrot.slane %v1095, %v1098
        %1101 = vbcast.lane.b32.xlu0 %v1099, 256
        %v1102 = vpop.permute.xlu0 %1101
        %v1103 = vlaneseq
        %v1104 = vshrl.u32 %v1103, 7
        %v1105 = vsub.s32 1, %v1104
        %v1106 = vrot.slane %v1095, %v1105
        %1108 = vbcast.lane.b32.xlu0 %v1106, 256
        %v1109 = vpop.permute.xlu0 %1108
        %v1110 = vld [vmem:[#allocation14] sm:$0xff]
        %v1111 = vld [vmem:[#allocation14 + $0x8] sm:$0xff]
        %v1112 = vmul.f32 %v1102, %v1110
        %v1113 = vmul.f32 %v1109, %v1111
        %v1114 = vsel %vm588, %v1112, 0.0
        %v1115 = vrot.slane %v1114, 4
        %v1116 = vadd.f32 %v1114, %v1115
        %v1117 = vrot.slane %v1116, 2
        %v1118 = vadd.f32 %v1116, %v1117
        %v1119 = vrot.slane %v1118, 1
        %v1120 = vadd.f32 %v1118, %v1119
        %v1121 = vsel %vm588, %v1113, 0.0
        %v1122 = vrot.slane %v1121, 4
        %v1123 = vadd.f32 %v1121, %v1122
        %v1124 = vrot.slane %v1123, 2
        %v1125 = vadd.f32 %v1123, %v1124
        %v1126 = vrot.slane %v1125, 1
        %v1127 = vadd.f32 %v1125, %v1126
        %v1128 = vld [vmem:[#allocation9 + $0x28] sm:$0xff]
        %v1129 = vld [vmem:[#allocation9 + $0x58] sm:$0xff]
        %v1130 = vld [vmem:[#allocation9 + $0x88] sm:$0xff]
        %v1131 = vld [vmem:[#allocation9 + $0xb8] sm:$0xff]
        %v1132 = vld [vmem:[#allocation9 + $0xe8] sm:$0xff]
        %v1133 = vld [vmem:[#allocation9 + $0x118] sm:$0xff]
        %v1134 = vld [vmem:[#allocation9 + $0x148] sm:$0xff]
        %1135 = vmatprep.subr.mxu0 0.0
        %1136 = vmatpush1.msra.mxu0 %v1133
        %1137 = vmatprep.subr.mxu0 0.0
        %1138 = vmatpush1.msra.mxu0 %v1134
        %1139 = vmatprep.subr.mxu0 0.0
        %1140 = vmatpush1.msra.mxu0 0.0
        %1141 = vmatprep.subr.mxu0 0.0
        %1142 = vmatpush1.msra.mxu0 0.0
        %1143 = vmatprep.subr.mxu0 0.0
        %1144 = vmatpush1.msra.mxu0 0.0
        %1145 = vmatprep.subr.mxu0 0.0
        %1146 = vmatpush1.msra.mxu0 0.0
        %1147 = vmatprep.subr.mxu0 0.0
        %1148 = vmatpush1.msra.mxu0 0.0
        %1149 = vmatprep.subr.mxu0 0.0
        %1150 = vmatpush1.msra.mxu0 0.0
        %1151 = vmatprep.subr.mxu0 0.0
        %1152 = vmatpush1.msra.mxu0 0.0
        %1153 = vmatprep.subr.mxu0 0.0
        %1154 = vmatpush1.msra.mxu0 0.0
        %1155 = vmatprep.subr.mxu0 0.0
        %1156 = vmatpush1.msra.mxu0 0.0
        %1157 = vmatprep.subr.mxu0 0.0
        %1158 = vmatpush1.msra.mxu0 0.0
        %1159 = vmatprep.subr.mxu0 0.0
        %1160 = vmatpush1.msra.mxu0 0.0
        %1161 = vmatprep.subr.mxu0 0.0
        %1162 = vmatpush1.msra.mxu0 0.0
        %1163 = vmatprep.subr.mxu0 0.0
        %1164 = vmatpush1.msra.mxu0 0.0
        %1165 = vmatprep.subr.mxu0 0.0
        %1166 = vmatpush1.msra.mxu0 0.0
        %1167 = vmatprep.subr.mxu0 0.0
        %1168 = vmatpush1.msra.mxu0 0.0
        %1169 = vmatprep.subr.mxu0 0.0
        %1170 = vmatpush1.msra.mxu0 0.0
        %1171 = vmatprep.subr.mxu0 0.0
        %1172 = vmatpush1.msra.mxu0 0.0
        %1173 = vmatprep.subr.mxu0 0.0
        %1174 = vmatpush1.msra.mxu0 0.0
        %1175 = vmatprep.subr.mxu0 0.0
        %1176 = vmatpush1.msra.mxu0 0.0
        %1177 = vmatprep.subr.mxu0 0.0
        %1178 = vmatpush1.msra.mxu0 0.0
        %1179 = vmatprep.subr.mxu0 0.0
        %1180 = vmatpush1.msra.mxu0 0.0
        %1181 = vmatprep.subr.mxu0 0.0
        %1182 = vmatpush1.msra.mxu0 0.0
        %1183 = vmatprep.subr.mxu0 0.0
        %1184 = vmatpush1.msra.mxu0 0.0
        %1185 = vmatprep.subr.mxu0 0.0
        %1186 = vmatpush1.msra.mxu0 0.0
        %1187 = vmatprep.subr.mxu0 0.0
        %1188 = vmatpush1.msra.mxu0 0.0
        %1189 = vmatprep.subr.mxu0 0.0
        %1190 = vmatpush1.msra.mxu0 0.0
        %1191 = vmatprep.subr.mxu0 0.0
        %1192 = vmatpush1.msra.mxu0 0.0
        %1193 = vmatprep.subr.mxu0 0.0
        %1194 = vmatpush1.msra.mxu0 0.0
        %1195 = vmatprep.subr.mxu0 0.0
        %1196 = vmatpush1.msra.mxu0 0.0
        %1197 = vmatprep.subr.mxu0 0.0
        %1198 = vmatpush1.msra.mxu0 0.0
        %1199 = vmatprep.mubr.f32.mxu0 0.0
        %1200 = vmatmul.mubr.f32.gmra.mrb[0].mxu0 %v771
        %v1201 = vpop.f32.mrb[0].mxu0
        %v1202 = vadd.f32 0.0, %v1201
        %v1203 = vpop.f32.mrb[0].mxu0
        %1204 = vdwg.mxu0
        %vm1207 = vcmask 1041409
        %v1208 = vsel %vm1207, %v1127, %v1120
        %v1209 = vsel %vm588, %v1208, 0
        %1211 = vmatprep.subr.mxu0 0.0
        %1212 = vmatpush1.msra.mxu0 %v1128
        %1213 = vmatprep.subr.mxu0 0.0
        %1214 = vmatpush1.msra.mxu0 %v1129
        %1215 = vmatprep.subr.mxu0 0.0
        %1216 = vmatpush1.msra.mxu0 %v1130
        %1217 = vmatprep.subr.mxu0 0.0
        %1218 = vmatpush1.msra.mxu0 %v1131
        %1219 = vmatprep.subr.mxu0 0.0
        %1220 = vmatpush1.msra.mxu0 %v1132
        %1221 = vmatprep.subr.mxu0 0.0
        %1222 = vmatpush1.msra.mxu0 0.0
        %1223 = vmatprep.subr.mxu0 0.0
        %1224 = vmatpush1.msra.mxu0 0.0
        %1225 = vmatprep.subr.mxu0 0.0
        %1226 = vmatpush1.msra.mxu0 0.0
        %1227 = vmatprep.subr.mxu0 0.0
        %1228 = vmatpush1.msra.mxu0 0.0
        %1229 = vmatprep.subr.mxu0 0.0
        %1230 = vmatpush1.msra.mxu0 0.0
        %1231 = vmatprep.subr.mxu0 0.0
        %1232 = vmatpush1.msra.mxu0 0.0
        %1233 = vmatprep.subr.mxu0 0.0
        %1234 = vmatpush1.msra.mxu0 0.0
        %1235 = vmatprep.subr.mxu0 0.0
        %1236 = vmatpush1.msra.mxu0 0.0
        %1237 = vmatprep.subr.mxu0 0.0
        %1238 = vmatpush1.msra.mxu0 0.0
        %1239 = vmatprep.subr.mxu0 0.0
        %1240 = vmatpush1.msra.mxu0 0.0
        %1241 = vmatprep.subr.mxu0 0.0
        %1242 = vmatpush1.msra.mxu0 0.0
        %1243 = vmatprep.subr.mxu0 0.0
        %1244 = vmatpush1.msra.mxu0 0.0
        %1245 = vmatprep.subr.mxu0 0.0
        %1246 = vmatpush1.msra.mxu0 0.0
        %1247 = vmatprep.subr.mxu0 0.0
        %1248 = vmatpush1.msra.mxu0 0.0
        %1249 = vmatprep.subr.mxu0 0.0
        %1250 = vmatpush1.msra.mxu0 0.0
        %1251 = vmatprep.subr.mxu0 0.0
        %1252 = vmatpush1.msra.mxu0 0.0
        %1253 = vmatprep.subr.mxu0 0.0
        %1254 = vmatpush1.msra.mxu0 0.0
        %1255 = vmatprep.subr.mxu0 0.0
        %1256 = vmatpush1.msra.mxu0 0.0
        %1257 = vmatprep.subr.mxu0 0.0
        %1258 = vmatpush1.msra.mxu0 0.0
        %1259 = vmatprep.subr.mxu0 0.0
        %1260 = vmatpush1.msra.mxu0 0.0
        %1261 = vmatprep.subr.mxu0 0.0
        %1262 = vmatpush1.msra.mxu0 0.0
        %1263 = vmatprep.subr.mxu0 0.0
        %1264 = vmatpush1.msra.mxu0 0.0
        %1265 = vmatprep.subr.mxu0 0.0
        %1266 = vmatpush1.msra.mxu0 0.0
        %1267 = vmatprep.subr.mxu0 0.0
        %1268 = vmatpush1.msra.mxu0 0.0
        %1269 = vmatprep.subr.mxu0 0.0
        %1270 = vmatpush1.msra.mxu0 0.0
        %1271 = vmatprep.subr.mxu0 0.0
        %1272 = vmatpush1.msra.mxu0 0.0
        %1273 = vmatprep.subr.mxu0 0.0
        %1274 = vmatpush1.msra.mxu0 0.0
        %1275 = vmatprep.mubr.f32.mxu0 0.0
        %1276 = vmatmul.mubr.f32.gmra.mrb[0].mxu0 %v1209
        %v1277 = vpop.f32.mrb[0].mxu0
        %v1278 = vadd.f32 %v1202, %v1277
        %v1279 = vpop.f32.mrb[0].mxu0
        %1280 = vdwg.mxu0
        %v1281 = vld [vmem:[#allocation9 + $0x328] ss:$0 sm:$0xff]
        %v1282 = vadd.f32 %v1278, %v1281
        %v1283 = vld [vmem:[#allocation9 + $0x10] sm:$0xff]
        %v1284 = vld [vmem:[#allocation9 + $0x40] sm:$0xff]
        %v1285 = vld [vmem:[#allocation9 + $0x70] sm:$0xff]
        %v1286 = vld [vmem:[#allocation9 + $0xa0] sm:$0xff]
        %v1287 = vld [vmem:[#allocation9 + $0xd0] sm:$0xff]
        %v1288 = vld [vmem:[#allocation9 + $0x100] sm:$0xff]
        %v1289 = vld [vmem:[#allocation9 + $0x130] sm:$0xff]
        %v1290 = vld [vmem:[#allocation9 + $0x160] sm:$0xff]
        %v1292 = vsel %vm427, %v305, 0
        %1294 = vmatprep.subr.mxu0 0.0
        %1295 = vmatpush1.msra.mxu0 %v1287
        %1296 = vmatprep.subr.mxu0 0.0
        %1297 = vmatpush1.msra.mxu0 %v1288
        %1298 = vmatprep.subr.mxu0 0.0
        %1299 = vmatpush1.msra.mxu0 %v1289
        %1300 = vmatprep.subr.mxu0 0.0
        %1301 = vmatpush1.msra.mxu0 %v1290
        %1302 = vmatprep.subr.mxu0 0.0
        %1303 = vmatpush1.msra.mxu0 0.0
        %1304 = vmatprep.subr.mxu0 0.0
        %1305 = vmatpush1.msra.mxu0 0.0
        %1306 = vmatprep.subr.mxu0 0.0
        %1307 = vmatpush1.msra.mxu0 0.0
        %1308 = vmatprep.subr.mxu0 0.0
        %1309 = vmatpush1.msra.mxu0 0.0
        %1310 = vmatprep.subr.mxu0 0.0
        %1311 = vmatpush1.msra.mxu0 0.0
        %1312 = vmatprep.subr.mxu0 0.0
        %1313 = vmatpush1.msra.mxu0 0.0
        %1314 = vmatprep.subr.mxu0 0.0
        %1315 = vmatpush1.msra.mxu0 0.0
        %1316 = vmatprep.subr.mxu0 0.0
        %1317 = vmatpush1.msra.mxu0 0.0
        %1318 = vmatprep.subr.mxu0 0.0
        %1319 = vmatpush1.msra.mxu0 0.0
        %1320 = vmatprep.subr.mxu0 0.0
        %1321 = vmatpush1.msra.mxu0 0.0
        %1322 = vmatprep.subr.mxu0 0.0
        %1323 = vmatpush1.msra.mxu0 0.0
        %1324 = vmatprep.subr.mxu0 0.0
        %1325 = vmatpush1.msra.mxu0 0.0
        %1326 = vmatprep.subr.mxu0 0.0
        %1327 = vmatpush1.msra.mxu0 0.0
        %1328 = vmatprep.subr.mxu0 0.0
        %1329 = vmatpush1.msra.mxu0 0.0
        %1330 = vmatprep.subr.mxu0 0.0
        %1331 = vmatpush1.msra.mxu0 0.0
        %1332 = vmatprep.subr.mxu0 0.0
        %1333 = vmatpush1.msra.mxu0 0.0
        %1334 = vmatprep.subr.mxu0 0.0
        %1335 = vmatpush1.msra.mxu0 0.0
        %1336 = vmatprep.subr.mxu0 0.0
        %1337 = vmatpush1.msra.mxu0 0.0
        %1338 = vmatprep.subr.mxu0 0.0
        %1339 = vmatpush1.msra.mxu0 0.0
        %1340 = vmatprep.subr.mxu0 0.0
        %1341 = vmatpush1.msra.mxu0 0.0
        %1342 = vmatprep.subr.mxu0 0.0
        %1343 = vmatpush1.msra.mxu0 0.0
        %1344 = vmatprep.subr.mxu0 0.0
        %1345 = vmatpush1.msra.mxu0 0.0
        %1346 = vmatprep.subr.mxu0 0.0
        %1347 = vmatpush1.msra.mxu0 0.0
        %1348 = vmatprep.subr.mxu0 0.0
        %1349 = vmatpush1.msra.mxu0 0.0
        %1350 = vmatprep.subr.mxu0 0.0
        %1351 = vmatpush1.msra.mxu0 0.0
        %1352 = vmatprep.subr.mxu0 0.0
        %1353 = vmatpush1.msra.mxu0 0.0
        %1354 = vmatprep.subr.mxu0 0.0
        %1355 = vmatpush1.msra.mxu0 0.0
        %1356 = vmatprep.subr.mxu0 0.0
        %1357 = vmatpush1.msra.mxu0 0.0
        %1358 = vmatprep.mubr.f32.mxu0 0.0
        %1359 = vmatmul.mubr.f32.gmra.mrb[0].mxu0 %v1292
        %v1360 = vpop.f32.mrb[0].mxu0
        %v1361 = vadd.f32 0.0, %v1360
        %v1362 = vpop.f32.mrb[0].mxu0
        %1363 = vdwg.mxu0
        %v1365 = vsel %vm427, %v1282, 0
        %1367 = vmatprep.subr.mxu0 0.0
        %1368 = vmatpush1.msra.mxu0 %v1283
        %1369 = vmatprep.subr.mxu0 0.0
        %1370 = vmatpush1.msra.mxu0 %v1284
        %1371 = vmatprep.subr.mxu0 0.0
        %1372 = vmatpush1.msra.mxu0 %v1285
        %1373 = vmatprep.subr.mxu0 0.0
        %1374 = vmatpush1.msra.mxu0 %v1286
        %1375 = vmatprep.subr.mxu0 0.0
        %1376 = vmatpush1.msra.mxu0 0.0
        %1377 = vmatprep.subr.mxu0 0.0
        %1378 = vmatpush1.msra.mxu0 0.0
        %1379 = vmatprep.subr.mxu0 0.0
        %1380 = vmatpush1.msra.mxu0 0.0
        %1381 = vmatprep.subr.mxu0 0.0
        %1382 = vmatpush1.msra.mxu0 0.0
        %1383 = vmatprep.subr.mxu0 0.0
        %1384 = vmatpush1.msra.mxu0 0.0
        %1385 = vmatprep.subr.mxu0 0.0
        %1386 = vmatpush1.msra.mxu0 0.0
        %1387 = vmatprep.subr.mxu0 0.0
        %1388 = vmatpush1.msra.mxu0 0.0
        %1389 = vmatprep.subr.mxu0 0.0
        %1390 = vmatpush1.msra.mxu0 0.0
        %1391 = vmatprep.subr.mxu0 0.0
        %1392 = vmatpush1.msra.mxu0 0.0
        %1393 = vmatprep.subr.mxu0 0.0
        %1394 = vmatpush1.msra.mxu0 0.0
        %1395 = vmatprep.subr.mxu0 0.0
        %1396 = vmatpush1.msra.mxu0 0.0
        %1397 = vmatprep.subr.mxu0 0.0
        %1398 = vmatpush1.msra.mxu0 0.0
        %1399 = vmatprep.subr.mxu0 0.0
        %1400 = vmatpush1.msra.mxu0 0.0
        %1401 = vmatprep.subr.mxu0 0.0
        %1402 = vmatpush1.msra.mxu0 0.0
        %1403 = vmatprep.subr.mxu0 0.0
        %1404 = vmatpush1.msra.mxu0 0.0
        %1405 = vmatprep.subr.mxu0 0.0
        %1406 = vmatpush1.msra.mxu0 0.0
        %1407 = vmatprep.subr.mxu0 0.0
        %1408 = vmatpush1.msra.mxu0 0.0
        %1409 = vmatprep.subr.mxu0 0.0
        %1410 = vmatpush1.msra.mxu0 0.0
        %1411 = vmatprep.subr.mxu0 0.0
        %1412 = vmatpush1.msra.mxu0 0.0
        %1413 = vmatprep.subr.mxu0 0.0
        %1414 = vmatpush1.msra.mxu0 0.0
        %1415 = vmatprep.subr.mxu0 0.0
        %1416 = vmatpush1.msra.mxu0 0.0
        %1417 = vmatprep.subr.mxu0 0.0
        %1418 = vmatpush1.msra.mxu0 0.0
        %1419 = vmatprep.subr.mxu0 0.0
        %1420 = vmatpush1.msra.mxu0 0.0
        %1421 = vmatprep.subr.mxu0 0.0
        %1422 = vmatpush1.msra.mxu0 0.0
        %1423 = vmatprep.subr.mxu0 0.0
        %1424 = vmatpush1.msra.mxu0 0.0
        %1425 = vmatprep.subr.mxu0 0.0
        %1426 = vmatpush1.msra.mxu0 0.0
        %1427 = vmatprep.subr.mxu0 0.0
        %1428 = vmatpush1.msra.mxu0 0.0
        %1429 = vmatprep.subr.mxu0 0.0
        %1430 = vmatpush1.msra.mxu0 0.0
        %1431 = vmatprep.mubr.f32.mxu0 0.0
        %1432 = vmatmul.mubr.f32.gmra.mrb[0].mxu0 %v1365
        %v1433 = vpop.f32.mrb[0].mxu0
        %v1434 = vadd.f32 %v1361, %v1433
        %v1435 = vpop.f32.mrb[0].mxu0
        %1436 = vdwg.mxu0
        %v1437 = vld [vmem:[#allocation9 + $0x310] ss:$0 sm:$0xff]
        %v1438 = vadd.f32 %v1434, %v1437
        %v1439 = vmul.f32 %v1438, 0.5
        %v1440 = vtanh.pop %v1439
        %v1441 = vadd.f32 %v1440, 1.0
        %v1442 = vmul.f32 %v1441, 0.5
        %v1443 = vtanh.pop %v1438
        %1445 = vrot.lane.b32.xlu0 %v306, 32
        %v1446 = vpop.permute.xlu0 %1445
        %v1448 = vmul.f32 %v1442, %v1446
        %1450 = vrot.lane.b32.xlu0 %v1443, 64
        %v1451 = vpop.permute.xlu0 %1450
        %v1453 = vmul.f32 %v1442, %v1451
        %1455 = vrot.lane.b32.xlu0 %v1453, 32
        %v1456 = vpop.permute.xlu0 %1455
        %v1458 = vadd.f32 %v1448, %v1456
        %v1459 = vtanh.pop %v1458
        %1461 = vrot.lane.b32.xlu0 %v1459, 64
        %v1462 = vpop.permute.xlu0 %1461
        %v1464 = vmul.f32 %v1442, %v1462
        %1466 = vrot.lane.b32.xlu0 %v1464, 32
        %v1467 = vpop.permute.xlu0 %1466
        %v1469 = vadd.f32 %v1282, %v1467
        %v1470 = vld [vmem:[#allocation9 + $0x18] sm:$0xff]
        %v1471 = vld [vmem:[#allocation9 + $0x48] sm:$0xff]
        %v1472 = vld [vmem:[#allocation9 + $0x78] sm:$0xff]
        %v1473 = vld [vmem:[#allocation9 + $0xa8] sm:$0xff]
        %v1474 = vld [vmem:[#allocation9 + $0xd8] sm:$0xff]
        %v1475 = vld [vmem:[#allocation9 + $0x108] sm:$0xff]
        %v1476 = vld [vmem:[#allocation9 + $0x138] sm:$0xff]
        %v1477 = vld [vmem:[#allocation9 + $0x168] sm:$0xff]
        %v1479 = vsel %vm427, %v307, 0
        %1481 = vmatprep.subr.mxu0 0.0
        %1482 = vmatpush1.msra.mxu0 %v1474
        %1483 = vmatprep.subr.mxu0 0.0
        %1484 = vmatpush1.msra.mxu0 %v1475
        %1485 = vmatprep.subr.mxu0 0.0
        %1486 = vmatpush1.msra.mxu0 %v1476
        %1487 = vmatprep.subr.mxu0 0.0
        %1488 = vmatpush1.msra.mxu0 %v1477
        %1489 = vmatprep.subr.mxu0 0.0
        %1490 = vmatpush1.msra.mxu0 0.0
        %1491 = vmatprep.subr.mxu0 0.0
        %1492 = vmatpush1.msra.mxu0 0.0
        %1493 = vmatprep.subr.mxu0 0.0
        %1494 = vmatpush1.msra.mxu0 0.0
        %1495 = vmatprep.subr.mxu0 0.0
        %1496 = vmatpush1.msra.mxu0 0.0
        %1497 = vmatprep.subr.mxu0 0.0
        %1498 = vmatpush1.msra.mxu0 0.0
        %1499 = vmatprep.subr.mxu0 0.0
        %1500 = vmatpush1.msra.mxu0 0.0
        %1501 = vmatprep.subr.mxu0 0.0
        %1502 = vmatpush1.msra.mxu0 0.0
        %1503 = vmatprep.subr.mxu0 0.0
        %1504 = vmatpush1.msra.mxu0 0.0
        %1505 = vmatprep.subr.mxu0 0.0
        %1506 = vmatpush1.msra.mxu0 0.0
        %1507 = vmatprep.subr.mxu0 0.0
        %1508 = vmatpush1.msra.mxu0 0.0
        %1509 = vmatprep.subr.mxu0 0.0
        %1510 = vmatpush1.msra.mxu0 0.0
        %1511 = vmatprep.subr.mxu0 0.0
        %1512 = vmatpush1.msra.mxu0 0.0
        %1513 = vmatprep.subr.mxu0 0.0
        %1514 = vmatpush1.msra.mxu0 0.0
        %1515 = vmatprep.subr.mxu0 0.0
        %1516 = vmatpush1.msra.mxu0 0.0
        %1517 = vmatprep.subr.mxu0 0.0
        %1518 = vmatpush1.msra.mxu0 0.0
        %1519 = vmatprep.subr.mxu0 0.0
        %1520 = vmatpush1.msra.mxu0 0.0
        %1521 = vmatprep.subr.mxu0 0.0
        %1522 = vmatpush1.msra.mxu0 0.0
        %1523 = vmatprep.subr.mxu0 0.0
        %1524 = vmatpush1.msra.mxu0 0.0
        %1525 = vmatprep.subr.mxu0 0.0
        %1526 = vmatpush1.msra.mxu0 0.0
        %1527 = vmatprep.subr.mxu0 0.0
        %1528 = vmatpush1.msra.mxu0 0.0
        %1529 = vmatprep.subr.mxu0 0.0
        %1530 = vmatpush1.msra.mxu0 0.0
        %1531 = vmatprep.subr.mxu0 0.0
        %1532 = vmatpush1.msra.mxu0 0.0
        %1533 = vmatprep.subr.mxu0 0.0
        %1534 = vmatpush1.msra.mxu0 0.0
        %1535 = vmatprep.subr.mxu0 0.0
        %1536 = vmatpush1.msra.mxu0 0.0
        %1537 = vmatprep.subr.mxu0 0.0
        %1538 = vmatpush1.msra.mxu0 0.0
        %1539 = vmatprep.subr.mxu0 0.0
        %1540 = vmatpush1.msra.mxu0 0.0
        %1541 = vmatprep.subr.mxu0 0.0
        %1542 = vmatpush1.msra.mxu0 0.0
        %1543 = vmatprep.subr.mxu0 0.0
        %1544 = vmatpush1.msra.mxu0 0.0
        %1545 = vmatprep.mubr.f32.mxu0 0.0
        %1546 = vmatmul.mubr.f32.gmra.mrb[0].mxu0 %v1479
        %v1547 = vpop.f32.mrb[0].mxu0
        %v1548 = vadd.f32 0.0, %v1547
        %v1549 = vpop.f32.mrb[0].mxu0
        %1550 = vdwg.mxu0
        %v1552 = vsel %vm427, %v1469, 0
        %1554 = vmatprep.subr.mxu0 0.0
        %1555 = vmatpush1.msra.mxu0 %v1470
        %1556 = vmatprep.subr.mxu0 0.0
        %1557 = vmatpush1.msra.mxu0 %v1471
        %1558 = vmatprep.subr.mxu0 0.0
        %1559 = vmatpush1.msra.mxu0 %v1472
        %1560 = vmatprep.subr.mxu0 0.0
        %1561 = vmatpush1.msra.mxu0 %v1473
        %1562 = vmatprep.subr.mxu0 0.0
        %1563 = vmatpush1.msra.mxu0 0.0
        %1564 = vmatprep.subr.mxu0 0.0
        %1565 = vmatpush1.msra.mxu0 0.0
        %1566 = vmatprep.subr.mxu0 0.0
        %1567 = vmatpush1.msra.mxu0 0.0
        %1568 = vmatprep.subr.mxu0 0.0
        %1569 = vmatpush1.msra.mxu0 0.0
        %1570 = vmatprep.subr.mxu0 0.0
        %1571 = vmatpush1.msra.mxu0 0.0
        %1572 = vmatprep.subr.mxu0 0.0
        %1573 = vmatpush1.msra.mxu0 0.0
        %1574 = vmatprep.subr.mxu0 0.0
        %1575 = vmatpush1.msra.mxu0 0.0
        %1576 = vmatprep.subr.mxu0 0.0
        %1577 = vmatpush1.msra.mxu0 0.0
        %1578 = vmatprep.subr.mxu0 0.0
        %1579 = vmatpush1.msra.mxu0 0.0
        %1580 = vmatprep.subr.mxu0 0.0
        %1581 = vmatpush1.msra.mxu0 0.0
        %1582 = vmatprep.subr.mxu0 0.0
        %1583 = vmatpush1.msra.mxu0 0.0
        %1584 = vmatprep.subr.mxu0 0.0
        %1585 = vmatpush1.msra.mxu0 0.0
        %1586 = vmatprep.subr.mxu0 0.0
        %1587 = vmatpush1.msra.mxu0 0.0
        %1588 = vmatprep.subr.mxu0 0.0
        %1589 = vmatpush1.msra.mxu0 0.0
        %1590 = vmatprep.subr.mxu0 0.0
        %1591 = vmatpush1.msra.mxu0 0.0
        %1592 = vmatprep.subr.mxu0 0.0
        %1593 = vmatpush1.msra.mxu0 0.0
        %1594 = vmatprep.subr.mxu0 0.0
        %1595 = vmatpush1.msra.mxu0 0.0
        %1596 = vmatprep.subr.mxu0 0.0
        %1597 = vmatpush1.msra.mxu0 0.0
        %1598 = vmatprep.subr.mxu0 0.0
        %1599 = vmatpush1.msra.mxu0 0.0
        %1600 = vmatprep.subr.mxu0 0.0
        %1601 = vmatpush1.msra.mxu0 0.0
        %1602 = vmatprep.subr.mxu0 0.0
        %1603 = vmatpush1.msra.mxu0 0.0
        %1604 = vmatprep.subr.mxu0 0.0
        %1605 = vmatpush1.msra.mxu0 0.0
        %1606 = vmatprep.subr.mxu0 0.0
        %1607 = vmatpush1.msra.mxu0 0.0
        %1608 = vmatprep.subr.mxu0 0.0
        %1609 = vmatpush1.msra.mxu0 0.0
        %1610 = vmatprep.subr.mxu0 0.0
        %1611 = vmatpush1.msra.mxu0 0.0
        %1612 = vmatprep.subr.mxu0 0.0
        %1613 = vmatpush1.msra.mxu0 0.0
        %1614 = vmatprep.subr.mxu0 0.0
        %1615 = vmatpush1.msra.mxu0 0.0
        %1616 = vmatprep.subr.mxu0 0.0
        %1617 = vmatpush1.msra.mxu0 0.0
        %1618 = vmatprep.mubr.f32.mxu0 0.0
        %1619 = vmatmul.mubr.f32.gmra.mrb[0].mxu0 %v1552
        %v1620 = vpop.f32.mrb[0].mxu0
        %v1621 = vadd.f32 %v1548, %v1620
        %v1622 = vpop.f32.mrb[0].mxu0
        %1623 = vdwg.mxu0
        %v1624 = vld [vmem:[#allocation9 + $0x318] ss:$0 sm:$0xff]
        %v1625 = vadd.f32 %v1621, %v1624
        %v1626 = vmul.f32 %v1625, 0.5
        %v1627 = vtanh.pop %v1626
        %v1628 = vadd.f32 %v1627, 1.0
        %v1629 = vmul.f32 %v1628, 0.5
        %v1630 = vtanh.pop %v1625
        %1632 = vrot.lane.b32.xlu0 %v308, 32
        %v1633 = vpop.permute.xlu0 %1632
        %v1635 = vmul.f32 %v1629, %v1633
        %1637 = vrot.lane.b32.xlu0 %v1630, 64
        %v1638 = vpop.permute.xlu0 %1637
        %v1640 = vmul.f32 %v1629, %v1638
        %1642 = vrot.lane.b32.xlu0 %v1640, 32
        %v1643 = vpop.permute.xlu0 %1642
        %v1645 = vadd.f32 %v1635, %v1643
        %v1646 = vtanh.pop %v1645
        %1648 = vrot.lane.b32.xlu0 %v1646, 64
        %v1649 = vpop.permute.xlu0 %1648
        %v1651 = vmul.f32 %v1629, %v1649
        %1653 = vrot.lane.b32.xlu0 %v1651, 32
        %v1654 = vpop.permute.xlu0 %1653
        %v1656 = vadd.f32 %v1469, %v1654
        %v1657 = vld [vmem:[#allocation9 + $0x28] sm:$0xff]
        %v1658 = vld [vmem:[#allocation9 + $0x58] sm:$0xff]
        %v1659 = vld [vmem:[#allocation9 + $0x88] sm:$0xff]
        %v1660 = vld [vmem:[#allocation9 + $0xb8] sm:$0xff]
        %v1661 = vld [vmem:[#allocation9 + $0xe8] sm:$0xff]
        %v1662 = vld [vmem:[#allocation9 + $0x118] sm:$0xff]
        %v1663 = vld [vmem:[#allocation9 + $0x148] sm:$0xff]
        %v1664 = vld [vmem:[#allocation9 + $0x178] sm:$0xff]
        %v1665 = vld [vmem:[#allocation9 + $0x1a8] sm:$0xff]
        %1671 = vrot.lane.b32.xlu0 %v1661, 96
        %v1672 = vpop.permute.xlu0 %1671
        %1673 = vrot.lane.b32.xlu0 %v1662, 96
        %v1674 = vpop.permute.xlu0 %1673
        %1675 = vrot.lane.b32.xlu0 %v1663, 96
        %v1676 = vpop.permute.xlu0 %1675
        %1677 = vrot.lane.b32.xlu0 %v1664, 96
        %v1678 = vpop.permute.xlu0 %1677
        %1679 = vrot.lane.b32.xlu0 %v1665, 96
        %v1680 = vpop.permute.xlu0 %1679
        %1686 = vmatprep.subr.mxu0 0.0
        %1687 = vmatpush1.msra.mxu0 %v1672
        %1688 = vmatprep.subr.mxu0 0.0
        %1689 = vmatpush1.msra.mxu0 %v1674
        %1690 = vmatprep.subr.mxu0 0.0
        %1691 = vmatpush1.msra.mxu0 %v1676
        %1692 = vmatprep.subr.mxu0 0.0
        %1693 = vmatpush1.msra.mxu0 %v1678
        %1694 = vmatprep.subr.mxu0 0.0
        %1695 = vmatpush1.msra.mxu0 %v1680
        %1696 = vmatprep.subr.mxu0 0.0
        %1697 = vmatpush1.msra.mxu0 0.0
        %1698 = vmatprep.subr.mxu0 0.0
        %1699 = vmatpush1.msra.mxu0 0.0
        %1700 = vmatprep.subr.mxu0 0.0
        %1701 = vmatpush1.msra.mxu0 0.0
        %1702 = vmatprep.subr.mxu0 0.0
        %1703 = vmatpush1.msra.mxu0 0.0
        %1704 = vmatprep.subr.mxu0 0.0
        %1705 = vmatpush1.msra.mxu0 0.0
        %1706 = vmatprep.subr.mxu0 0.0
        %1707 = vmatpush1.msra.mxu0 0.0
        %1708 = vmatprep.subr.mxu0 0.0
        %1709 = vmatpush1.msra.mxu0 0.0
        %1710 = vmatprep.subr.mxu0 0.0
        %1711 = vmatpush1.msra.mxu0 0.0
        %1712 = vmatprep.subr.mxu0 0.0
        %1713 = vmatpush1.msra.mxu0 0.0
        %1714 = vmatprep.subr.mxu0 0.0
        %1715 = vmatpush1.msra.mxu0 0.0
        %1716 = vmatprep.subr.mxu0 0.0
        %1717 = vmatpush1.msra.mxu0 0.0
        %1718 = vmatprep.subr.mxu0 0.0
        %1719 = vmatpush1.msra.mxu0 0.0
        %1720 = vmatprep.subr.mxu0 0.0
        %1721 = vmatpush1.msra.mxu0 0.0
        %1722 = vmatprep.subr.mxu0 0.0
        %1723 = vmatpush1.msra.mxu0 0.0
        %1724 = vmatprep.subr.mxu0 0.0
        %1725 = vmatpush1.msra.mxu0 0.0
        %1726 = vmatprep.subr.mxu0 0.0
        %1727 = vmatpush1.msra.mxu0 0.0
        %1728 = vmatprep.subr.mxu0 0.0
        %1729 = vmatpush1.msra.mxu0 0.0
        %1730 = vmatprep.subr.mxu0 0.0
        %1731 = vmatpush1.msra.mxu0 0.0
        %1732 = vmatprep.subr.mxu0 0.0
        %1733 = vmatpush1.msra.mxu0 0.0
        %1734 = vmatprep.subr.mxu0 0.0
        %1735 = vmatpush1.msra.mxu0 0.0
        %1736 = vmatprep.subr.mxu0 0.0
        %1737 = vmatpush1.msra.mxu0 0.0
        %1738 = vmatprep.subr.mxu0 0.0
        %1739 = vmatpush1.msra.mxu0 0.0
        %1740 = vmatprep.subr.mxu0 0.0
        %1741 = vmatpush1.msra.mxu0 0.0
        %1742 = vmatprep.subr.mxu0 0.0
        %1743 = vmatpush1.msra.mxu0 0.0
        %1744 = vmatprep.subr.mxu0 0.0
        %1745 = vmatpush1.msra.mxu0 0.0
        %1746 = vmatprep.subr.mxu0 0.0
        %1747 = vmatpush1.msra.mxu0 0.0
        %1748 = vmatprep.subr.mxu0 0.0
        %1749 = vmatpush1.msra.mxu0 0.0
        %1750 = vmatprep.mubr.f32.mxu0 0.0
        %1751 = vmatmul.mubr.f32.gmra.mrb[0].mxu0 %v1209
        %v1752 = vpop.f32.mrb[0].mxu0
        %v1753 = vadd.f32 0.0, %v1752
        %v1754 = vpop.f32.mrb[0].mxu0
        %1755 = vdwg.mxu0
        %1760 = vrot.lane.b32.xlu0 %v1657, 96
        %v1761 = vpop.permute.xlu0 %1760
        %1762 = vrot.lane.b32.xlu0 %v1658, 96
        %v1763 = vpop.permute.xlu0 %1762
        %1764 = vrot.lane.b32.xlu0 %v1659, 96
        %v1765 = vpop.permute.xlu0 %1764
        %1766 = vrot.lane.b32.xlu0 %v1660, 96
        %v1767 = vpop.permute.xlu0 %1766
        %v1773 = vsel %vm427, %v1656, 0
        %1775 = vmatprep.subr.mxu0 0.0
        %1776 = vmatpush1.msra.mxu0 %v1761
        %1777 = vmatprep.subr.mxu0 0.0
        %1778 = vmatpush1.msra.mxu0 %v1763
        %1779 = vmatprep.subr.mxu0 0.0
        %1780 = vmatpush1.msra.mxu0 %v1765
        %1781 = vmatprep.subr.mxu0 0.0
        %1782 = vmatpush1.msra.mxu0 %v1767
        %1783 = vmatprep.subr.mxu0 0.0
        %1784 = vmatpush1.msra.mxu0 0.0
        %1785 = vmatprep.subr.mxu0 0.0
        %1786 = vmatpush1.msra.mxu0 0.0
        %1787 = vmatprep.subr.mxu0 0.0
        %1788 = vmatpush1.msra.mxu0 0.0
        %1789 = vmatprep.subr.mxu0 0.0
        %1790 = vmatpush1.msra.mxu0 0.0
        %1791 = vmatprep.subr.mxu0 0.0
        %1792 = vmatpush1.msra.mxu0 0.0
        %1793 = vmatprep.subr.mxu0 0.0
        %1794 = vmatpush1.msra.mxu0 0.0
        %1795 = vmatprep.subr.mxu0 0.0
        %1796 = vmatpush1.msra.mxu0 0.0
        %1797 = vmatprep.subr.mxu0 0.0
        %1798 = vmatpush1.msra.mxu0 0.0
        %1799 = vmatprep.subr.mxu0 0.0
        %1800 = vmatpush1.msra.mxu0 0.0
        %1801 = vmatprep.subr.mxu0 0.0
        %1802 = vmatpush1.msra.mxu0 0.0
        %1803 = vmatprep.subr.mxu0 0.0
        %1804 = vmatpush1.msra.mxu0 0.0
        %1805 = vmatprep.subr.mxu0 0.0
        %1806 = vmatpush1.msra.mxu0 0.0
        %1807 = vmatprep.subr.mxu0 0.0
        %1808 = vmatpush1.msra.mxu0 0.0
        %1809 = vmatprep.subr.mxu0 0.0
        %1810 = vmatpush1.msra.mxu0 0.0
        %1811 = vmatprep.subr.mxu0 0.0
        %1812 = vmatpush1.msra.mxu0 0.0
        %1813 = vmatprep.subr.mxu0 0.0
        %1814 = vmatpush1.msra.mxu0 0.0
        %1815 = vmatprep.subr.mxu0 0.0
        %1816 = vmatpush1.msra.mxu0 0.0
        %1817 = vmatprep.subr.mxu0 0.0
        %1818 = vmatpush1.msra.mxu0 0.0
        %1819 = vmatprep.subr.mxu0 0.0
        %1820 = vmatpush1.msra.mxu0 0.0
        %1821 = vmatprep.subr.mxu0 0.0
        %1822 = vmatpush1.msra.mxu0 0.0
        %1823 = vmatprep.subr.mxu0 0.0
        %1824 = vmatpush1.msra.mxu0 0.0
        %1825 = vmatprep.subr.mxu0 0.0
        %1826 = vmatpush1.msra.mxu0 0.0
        %1827 = vmatprep.subr.mxu0 0.0
        %1828 = vmatpush1.msra.mxu0 0.0
        %1829 = vmatprep.subr.mxu0 0.0
        %1830 = vmatpush1.msra.mxu0 0.0
        %1831 = vmatprep.subr.mxu0 0.0
        %1832 = vmatpush1.msra.mxu0 0.0
        %1833 = vmatprep.subr.mxu0 0.0
        %1834 = vmatpush1.msra.mxu0 0.0
        %1835 = vmatprep.subr.mxu0 0.0
        %1836 = vmatpush1.msra.mxu0 0.0
        %1837 = vmatprep.subr.mxu0 0.0
        %1838 = vmatpush1.msra.mxu0 0.0
        %1839 = vmatprep.mubr.f32.mxu0 0.0
        %1840 = vmatmul.mubr.f32.gmra.mrb[0].mxu0 %v1773
        %v1841 = vpop.f32.mrb[0].mxu0
        %v1842 = vadd.f32 %v1753, %v1841
        %v1843 = vpop.f32.mrb[0].mxu0
        %1844 = vdwg.mxu0
        %1846 = vrot.lane.b32.xlu0 %v1281, 96
        %v1847 = vpop.permute.xlu0 %1846
        %v1849 = vadd.f32 %v1842, %v1847
        %v1850 = vmul.f32 %v1849, 0.5
        %v1851 = vtanh.pop %v1850
        %v1852 = vadd.f32 %v1851, 1.0
        %v1853 = vmul.f32 %v1852, 0.5
        %vm1855 = vcmask 123904
        %1856 = vst.msk [vmem:[#allocation2] sm:$0x3] %vm1855, %v770
        %vm1858 = vcmask 320512
        %1859 = vst.msk [vmem:[#allocation3] sm:$0x3] %vm1858, %v1208
        %vm1860 = vcmask 254976
        %1861 = vst.msk [vmem:[#allocation4] sm:$0x3] %vm1860, %v1467
        %1863 = vrot.lane.b32.xlu0 %v1458, 96
        %v1864 = vpop.permute.xlu0 %1863
        %1866 = vst.msk [vmem:[#allocation5] sm:$0x3] %vm1860, %v1864
        %1867 = vst.msk [vmem:[#allocation6] sm:$0x3] %vm1860, %v1654
        %1869 = vrot.lane.b32.xlu0 %v1645, 96
        %v1870 = vpop.permute.xlu0 %1869
        %1872 = vst.msk [vmem:[#allocation7] sm:$0x3] %vm1860, %v1870
        %v1873 = vadd.f32 %v309, %v1095
        %1874 = vst.msk [vmem:[#allocation8] sm:$0x3] %vm1084, %v1873
        %1876 = vrot.lane.b32.xlu0 %v1095, 16
        %v1877 = vpop.permute.xlu0 %1876
        %1879 = vrot.lane.b32.xlu0 %v764, 8
        %v1880 = vpop.permute.xlu0 %1879
        %1882 = vrot.lane.b32.xlu0 %v1464, 72
        %v1883 = vpop.permute.xlu0 %1882
        %1885 = vrot.lane.b32.xlu0 %v1651, 104
        %v1886 = vpop.permute.xlu0 %1885
        %1888 = vrot.lane.b32.xlu0 %v1458, 72
        %v1889 = vpop.permute.xlu0 %1888
        %1891 = vrot.lane.b32.xlu0 %v1645, 104
        %v1892 = vpop.permute.xlu0 %1891
        %1894 = vrot.lane.b32.xlu0 %v1208, 40
        %v1895 = vpop.permute.xlu0 %1894
        %1898 = vrot.lane.b32.xlu0 %v1853, 64
        %v1899 = vpop.permute.xlu0 %1898
        %v1901 = vsel %vm325, %v1849, %v1877
        %vm1902 = vcmask 195584
        %v1903 = vsel %vm1902, %v1901, %v1880
        %v1904 = vsel %vm588, %v1903, %v1883
        %vm1905 = vcmask 588800
        %v1906 = vsel %vm1905, %v1904, %v1886
        %vm1907 = vcmask 850944
        %v1908 = vsel %vm1907, %v1906, %v1889
        %v1909 = vsel %vm845, %v1889, %v1892
        %v1910 = vsel %vm588, %v1909, %v1895
        %vm1911 = vcmask 654336
        %v1912 = vsel %vm1911, %v1910, %v1899
        %vm1913 = vcmask 662528
        %v1914 = vsel %vm1913, %v1912, 0.0
        %v1917 = vcombine.low %v1908, %v1914
        %v1919 = vunpack.c.l.s4 1983009808
        %v1920 = vunpack.c.0.s8 %v1919
        %v1921 = vlaneseq
        %v1922 = vshrl.u32 %v1921, 7
        %v1923 = vsub.s32 %v1920, %v1922
        %v1924 = vrot.slane %v1917, %v1923
        %1926 = vst [vmem:[%s230] sm:$0xf] %v1924
        %s1927 = sand.u32 %s117, 1
        %s1928 = scalar_lea.sflag [#allocation11], %s1927
        %s1929 = sand.u32 %s117, 1
        %s1930 = smul.addr %s1929, 4
        %s1931 = scalar_lea.vmem [#allocation15], %s1930
        // Predicated region
        $region53: #{tpu_custom_call.1} parent=35 // pred_check
          %p1932 = pneg %p127
        $region54: #{tpu_custom_call.1} parent=35 // pred_check_branch
          %1934 = sbr.rel (%p1932) target = $region56
        $region55: #{tpu_custom_call.1} parent=35 // pred_region
          %s1936 = ssub.s32 64, 64
          %1937 = vsyncadd %s1928, %s1936
          %s1938 = smul.addr %s20, 2
          %s1939 = smul.addr %s1938, 32
          %s1940 = scalar_lea.hbm %s4, %s1939
          %s1942 = sshll.u32 %s1931, 4
          %s1943 = int_to_ptr.vmem [resolvable:$true] %s1942
          %1945 = dma.vmem_to_hbm [thread:$0]  %s1943, 64, %s1940, %s1928
        $region56: #{tpu_custom_call.1} parent=35 // pred_fallthru
          _
      $region36: #{tpu_custom_call.1} parent=5 // pred_fallthru
        _
      %p1946 = scmp.le.s32.totalorder 2, %s15
      // Predicated region
      $region57: #{tpu_custom_call.1} parent=5 // pred_check
        %p1947 = pneg %p1946
      $region58: #{tpu_custom_call.1} parent=5 // pred_check_branch
        %1949 = sbr.rel (%p1947) target = $region60
      $region59: #{tpu_custom_call.1} parent=5 // pred_region
        %s1950 = ssub.s32 %s15, 2
        // Predicated region
        $region61: #{tpu_custom_call.1} parent=59 // pred_check
          %p1951 = pneg %p133
        $region62: #{tpu_custom_call.1} parent=59 // pred_check_branch
          %1953 = sbr.rel (%p1951) target = $region64
        $region63: #{tpu_custom_call.1} parent=59 // pred_region
          %s1954 = sand.u32 %s118, 1
          %s1955 = scalar_lea.sflag [#allocation11], %s1954
          %s1956 = sand.u32 %s118, 1
          %s1957 = smul.addr %s1956, 4
          %s1958 = scalar_lea.vmem [#allocation15], %s1957
          %1959 = dma.done %s1955, 64
        $region64: #{tpu_custom_call.1} parent=59 // pred_fallthru
          _
      $region60: #{tpu_custom_call.1} parent=5 // pred_fallthru
        _
    $region6: #{tpu_custom_call.1} parent=1 // loop_footer
      %s19 = sadd.s32 1, %s15
    $region7: #{tpu_custom_call.1} parent=1 // loop_footer_branch
      %14 = sbr.rel target = $region3
    $region8: #{tpu_custom_call.1} parent=1 // loop_exit
      _
    %1960 = vsyncpa [#allocation10], 1
    %s1961 = scalar_lea.sflag [#allocation10], 1
    %1962 = vsyncpa %s1961, 1
    %1963 = vsyncpa [#allocation13], 1
    %1964 = vsyncpa [#allocation11], 1
    %s1965 = scalar_lea.sflag [#allocation11], 1
    %1966 = vsyncpa %s1965, 1

</llo_original>
